<compile_context>
chip_gen: v6e
topology: v6e:2x2x1
jax: 0.10.0
libtpu: 0.0.40
codegen_flags: <defaults>
</compile_context>

<pallas_src>
import functools

import numpy as np
import jax
import jax.numpy as jnp
from jax.experimental import pallas as pl
from jax.experimental.pallas import tpu as pltpu

LEAKY_SLOPE = 0.01   # nn.LeakyReLU() default negative_slope
BN_EPS = 1e-5        # nn.BatchNorm2d default eps


# ------------------------------ host-side tables ----------------------------

def _interp_matrix_1d(n_in, n_out):
    """1-D bilinear interpolation matrix, align_corners=True (matches nn.Upsample)."""
    m = np.zeros((n_out, n_in), dtype=np.float32)
    if n_in == 1:
        m[:, 0] = 1.0
        return m
    src = np.arange(n_out, dtype=np.float64) * (n_in - 1) / (n_out - 1)
    i0 = np.clip(np.floor(src).astype(np.int64), 0, n_in - 1)
    i1 = np.minimum(i0 + 1, n_in - 1)
    frac = (src - i0).astype(np.float32)
    for r in range(n_out):
        m[r, i0[r]] += 1.0 - frac[r]
        m[r, i1[r]] += frac[r]
    return m


def _tap_masks(Ho, Wo):
    """(9, Ho*Wo) f32 validity masks for the 3x3 SAME-conv taps in flat-roll form."""
    r = np.arange(Ho)[:, None]
    c = np.arange(Wo)[None, :]
    m = np.ones((9, Ho * Wo), np.float32)
    for ky in range(3):
        for kx in range(3):
            dy, dx = ky - 1, kx - 1
            ok = (r + dy >= 0) & (r + dy < Ho) & (c + dx >= 0) & (c + dx < Wo)
            m[ky * 3 + kx] = ok.reshape(-1).astype(np.float32)
    return m


# ------------------------- in-kernel helper functions -----------------------

def _taps_3x3(x_flat, masks, Wo, HW):
    """im2col patches for a 3x3 SAME conv without leaving the flat lane-dense
    (C, HW) layout: each tap is one XLU lane-roll plus a precomputed boundary-mask
    multiply (no (H+2, W+2) padding, no strided slices / lane-axis concats)."""
    taps = []
    for ky in range(3):
        for kx in range(3):
            d = (ky - 1) * Wo + (kx - 1)                 # flat offset of this tap
            if d == 0:
                taps.append(x_flat)
            else:
                t = pltpu.roll(x_flat, shift=(-d) % HW, axis=1)
                taps.append(t * masks[ky * 3 + kx:ky * 3 + kx + 1, :])
    return jnp.concatenate(taps, axis=0)                 # (9*C, HW), tap-major rows


# ------------------------------- fused kernel -------------------------------

def _upblock_fused_kernel(x1_ref, x2_ref, w1x1_ref, mup_ref, wc1_ref, wc2_ref,
                          eps_ref, masks_ref, o_ref, *,
                          NB, C1, C2, Cout, HW1, HW, Wo):
    f32 = jnp.float32
    cdt = x1_ref.dtype                          # MXU operand dtype (f32 / bf16)

    eps = eps_ref[...]                          # (Cmax, 5) packed epilogue constants
    b1x1 = eps[:C2, 0:1]
    s1, t1 = eps[:Cout, 1:2], eps[:Cout, 2:3]
    s2, t2 = eps[:Cout, 3:4], eps[:Cout, 4:5]
    masks = masks_ref[...]                      # (9, HW) boundary masks
    w1x1 = w1x1_ref[...]
    mup = mup_ref[...]

    # ---- stage 1 (per image): 1x1 conv -> bilinear x2 upsample (one kron matmul)
    #      -> channel concat -> roll/mask im2col taps.  Batch folds into lanes. ----
    patches = []
    for n in range(NB):                         # NB is small & static: unrolled
        x1n = x1_ref[n]                                                   # (C1, HW1)
        y = jnp.dot(w1x1, x1n, preferred_element_type=f32) + b1x1         # (C2, HW1)
        x1up = jnp.dot(y.astype(cdt), mup, preferred_element_type=f32)    # (C2, HW)
        xcat = jnp.concatenate([x2_ref[n].astype(f32), x1up], axis=0)     # (2*C2, HW)
        patches.append(_taps_3x3(xcat, masks, Wo, HW))                    # (9*2C2, HW)
    p1 = patches[0] if NB == 1 else jnp.concatenate(patches, axis=1)      # (., NB*HW)

    # ---- conv1: one MXU push over all NB*HW lanes; BN (bias folded) + LeakyReLU.
    #      Dropout == identity in eval mode. ----
    a1 = jnp.dot(wc1_ref[...], p1.astype(cdt), preferred_element_type=f32)
    a1 = a1 * s1 + t1
    h = jnp.where(a1 > 0, a1, LEAKY_SLOPE * a1)                           # (Cout, NB*HW)

    # ---- conv2 + BN + LeakyReLU (intermediate h never leaves VMEM) ----
    patches = []
    for n in range(NB):
        hn = h[:, n * HW:(n + 1) * HW]          # static, tile-aligned lane slice
        patches.append(_taps_3x3(hn, masks, Wo, HW))
    p2 = patches[0] if NB == 1 else jnp.concatenate(patches, axis=1)
    a2 = jnp.dot(wc2_ref[...], p2.astype(cdt), preferred_element_type=f32)
    a2 = a2 * s2 + t2
    out = jnp.where(a2 > 0, a2, LEAKY_SLOPE * a2)                         # (Cout, NB*HW)

    for n in range(NB):                         # full-lane-dense (Cout, HW) stores
        o_ref[n] = out[:, n * HW:(n + 1) * HW].astype(o_ref.dtype)


# --------------------------------- wrapper ----------------------------------

def upblock_forward(params, x1_nchw, x2_nchw, *, compute_dtype=jnp.float32):
    N, C1, H1, W1 = x1_nchw.shape
    Nb, C2, Ho, Wo = x2_nchw.shape
    assert Nb == N and Ho == 2 * H1 and Wo == 2 * W1
    Cout = params["k_wc2"].shape[0]
    Cin1 = 2 * C2
    HW1, HW = H1 * W1, Ho * Wo
    cdt = compute_dtype
    assert HW1 % 128 == 0 and HW % 128 == 0, "spatial extent must be lane-aligned"

    # Batch tiling: exactly 2 fat grid steps when N is even (both v7x TensorCores),
    # with the NB images of each step folded into the matmul lane axis.
    NB = N // 2 if (N % 2 == 0 and N >= 2) else 1
    grid = (N // NB,)

    kern = functools.partial(_upblock_fused_kernel, NB=NB, C1=C1, C2=C2, Cout=Cout,
                             HW1=HW1, HW=HW, Wo=Wo)
    fixed = lambda g: (0, 0)    # small constant tensors: same block every grid step

    # Rough per-step VMEM budget -> explicit scoped-VMEM limit (defaults are 16-32 MiB).
    live = 4 * NB * HW * (9 * max(Cin1, Cout) + Cin1 + 2 * Cout)
    blocks = 2 * 4 * NB * (C1 * HW1 + (C2 + Cout) * HW)
    weights = 2 * 4 * (C2 * C1 + HW1 * HW + 9 * Cout * (Cin1 + Cout) + 9 * HW + 40)
    vmem_limit = int(min(64 * 2**20, max(32 * 2**20, 2 * (live + blocks + weights))))

    # Row-major contiguous reshapes: free (no data movement), NCHW consumed directly.
    x1f = x1_nchw.reshape(N, C1, HW1).astype(cdt)
    x2f = x2_nchw.reshape(N, C2, HW).astype(cdt)

    out_flat = pl.pallas_call(
        kern,
        out_shape=jax.ShapeDtypeStruct((N, Cout, HW), x1_nchw.dtype),
        grid=grid,
        in_specs=[
            pl.BlockSpec((NB, C1, HW1), lambda g: (g, 0, 0)),   # x1 (flat NCHW)
            pl.BlockSpec((NB, C2, HW), lambda g: (g, 0, 0)),    # x2 skip (flat NCHW)
            pl.BlockSpec((C2, C1), fixed),                      # 1x1 conv weight
            pl.BlockSpec((HW1, HW), fixed),                     # bilinear kron matrix
            pl.BlockSpec((Cout, 9 * Cin1), fixed),              # conv1 im2col weight
            pl.BlockSpec((Cout, 9 * Cout), fixed),              # conv2 im2col weight
            pl.BlockSpec((max(C2, Cout), 5), fixed),            # packed bias/BN consts
            pl.BlockSpec((9, HW), fixed),                       # 3x3 tap boundary masks
        ],
        out_specs=pl.BlockSpec((NB, Cout, HW), lambda g: (g, 0, 0)),
        compiler_params=pltpu.CompilerParams(
            dimension_semantics=("parallel",),
            vmem_limit_bytes=vmem_limit),
    )(
        x1f, x2f,
        params["k_w1x1"].astype(cdt), params["k_mup"].astype(cdt),
        params["k_wc1"].astype(cdt), params["k_wc2"].astype(cdt),
        params["k_eps"], params["k_masks"],
    )
    # (N, Cout, Ho*Wo) -> NCHW: row-major, layout-free reshape.
    return out_flat.reshape(N, Cout, Ho, Wo)


# --------------------------------- parameters --------------------------------

def init_upblock_params(key, in_ch1, in_ch2, out_ch, h1, w1):
    ks = jax.random.split(key, 14)

    def normal(k, shape, s=0.1):
        return s * jax.random.normal(k, shape, dtype=jnp.float32)

    C1, C2, Cout = in_ch1, in_ch2, out_ch
    Cin1 = 2 * C2
    Ho, Wo = 2 * h1, 2 * w1
    p = {}
    # --- PyTorch-format parameters (the "spec" weights, used by the reference) ---
    p["w1x1_torch"] = normal(ks[0], (C2, C1, 1, 1))
    p["b1x1"] = normal(ks[1], (C2,))
    p["wc1_torch"] = normal(ks[2], (Cout, Cin1, 3, 3))
    p["bc1"] = normal(ks[3], (Cout,))
    p["wc2_torch"] = normal(ks[4], (Cout, Cout, 3, 3))
    p["bc2"] = normal(ks[5], (Cout,))
    p["gamma1"] = 1.0 + normal(ks[6], (Cout,)); p["beta1"] = normal(ks[7], (Cout,))
    p["mean1"] = normal(ks[8], (Cout,))
    p["var1"] = 1.0 + 0.5 * jax.random.uniform(ks[9], (Cout,))
    p["gamma2"] = 1.0 + normal(ks[10], (Cout,)); p["beta2"] = normal(ks[11], (Cout,))
    p["mean2"] = normal(ks[12], (Cout,))
    p["var2"] = 1.0 + 0.5 * jax.random.uniform(ks[13], (Cout,))
    # Bilinear x2 interpolation matrices (align_corners=True), separable 1-D.
    mh_np = _interp_matrix_1d(h1, Ho)                       # (Ho, H1)
    mw_np = _interp_matrix_1d(w1, Wo)                       # (Wo, W1)
    p["mh"], p["mw"] = jnp.asarray(mh_np), jnp.asarray(mw_np)

    # --- kernel-format parameters (precomputed once; free at init) ---
    p["k_w1x1"] = p["w1x1_torch"].reshape(C2, C1)
    # Full 2-D interpolation matrix: x1up_flat = y_flat @ k_mup, (H1*W1, Ho*Wo).
    p["k_mup"] = jnp.asarray(np.kron(mh_np, mw_np).T)
    # conv weights reordered for im2col: column = (ky*3+kx)*Cin + ci
    p["k_wc1"] = jnp.transpose(p["wc1_torch"], (0, 2, 3, 1)).reshape(Cout, 9 * Cin1)
    p["k_wc2"] = jnp.transpose(p["wc2_torch"], (0, 2, 3, 1)).reshape(Cout, 9 * Cout)
    # BN (eval) folded to affine, with the conv bias folded into the shift;
    # packed with the 1x1 bias into one (Cmax, 5) array (single tiny DMA).
    s1 = p["gamma1"] / jnp.sqrt(p["var1"] + BN_EPS)
    t1 = p["beta1"] - p["mean1"] * s1 + s1 * p["bc1"]
    s2 = p["gamma2"] / jnp.sqrt(p["var2"] + BN_EPS)
    t2 = p["beta2"] - p["mean2"] * s2 + s2 * p["bc2"]
    Cmax = max(C2, Cout)
    eps = jnp.zeros((Cmax, 5), jnp.float32)
    eps = eps.at[:C2, 0].set(p["b1x1"])
    eps = eps.at[:Cout, 1].set(s1)
    eps = eps.at[:Cout, 2].set(t1)
    eps = eps.at[:Cout, 3].set(s2)
    eps = eps.at[:Cout, 4].set(t2)
    p["k_eps"] = eps
    p["k_masks"] = jnp.asarray(_tap_masks(Ho, Wo))          # (9, Ho*Wo)
    return p


# --------------------------- pure-JAX reference ------------------------------

def reference_forward(params, x1, x2):
    P = jax.lax.Precision.HIGHEST
    dn = ("NCHW", "OIHW", "NCHW")
    y = jax.lax.conv_general_dilated(x1, params["w1x1_torch"], (1, 1), "VALID",
                                     dimension_numbers=dn, precision=P)
    y = y + params["b1x1"].reshape(1, -1, 1, 1)
    y = jnp.einsum("oh,nchw,pw->ncop", params["mh"], y, params["mw"], precision=P)
    x = jnp.concatenate([x2, y], axis=1)

    def conv_bn_lrelu(x, w, b, gamma, beta, mean, var):
        z = jax.lax.conv_general_dilated(x, w, (1, 1), "SAME",
                                         dimension_numbers=dn, precision=P)
        z = z + b.reshape(1, -1, 1, 1)
        z = (z - mean.reshape(1, -1, 1, 1)) / jnp.sqrt(var.reshape(1, -1, 1, 1) + BN_EPS)
        z = gamma.reshape(1, -1, 1, 1) * z + beta.reshape(1, -1, 1, 1)
        return jnp.where(z > 0, z, LEAKY_SLOPE * z)

    h = conv_bn_lrelu(x, params["wc1_torch"], params["bc1"],
                      params["gamma1"], params["beta1"], params["mean1"], params["var1"])
    # Dropout = identity (eval mode)
    out = conv_bn_lrelu(h, params["wc2_torch"], params["bc2"],
                        params["gamma2"], params["beta2"], params["mean2"], params["var2"])
    return out


if __name__ == "__main__":
    key = jax.random.PRNGKey(0)
    N, C1, C2, COUT = 2, 8, 4, 8          # in_channels1, in_channels2, out_channels
    H1 = W1 = 16                          # x1 spatial; x2 spatial = 2x (Ho*Wo = 1024 lanes)

    kx1, kx2, kp = jax.random.split(key, 3)
    x1 = jax.random.normal(kx1, (N, C1, H1, W1), dtype=jnp.float32)          # NCHW
    x2 = jax.random.normal(kx2, (N, C2, 2 * H1, 2 * W1), dtype=jnp.float32)  # NCHW

    params = init_upblock_params(kp, C1, C2, COUT, H1, W1)

    out = jax.block_until_ready(upblock_forward(params, x1, x2))
    ref = jax.block_until_ready(reference_forward(params, x1, x2))

    assert out.shape == (N, COUT, 2 * H1, 2 * W1), out.shape
    np.testing.assert_allclose(np.asarray(out), np.asarray(ref), rtol=1e-3, atol=1e-3)
    print("KERNEL_OK")
</pallas_src>

<mosaic_0001>
module attributes {stable_mosaic.version = 11 : i64} {
  func.func @_upblock_fused_kernel(%arg0: i32, %arg1: memref<1x8x256xf32, #tpu.memory_space<vmem>>, %arg2: memref<1x4x1024xf32, #tpu.memory_space<vmem>>, %arg3: memref<4x8xf32, #tpu.memory_space<vmem>>, %arg4: memref<256x1024xf32, #tpu.memory_space<vmem>>, %arg5: memref<8x72xf32, #tpu.memory_space<vmem>>, %arg6: memref<8x72xf32, #tpu.memory_space<vmem>>, %arg7: memref<8x5xf32, #tpu.memory_space<vmem>>, %arg8: memref<9x1024xf32, #tpu.memory_space<vmem>>, %arg9: memref<1x8x1024xf32, #tpu.memory_space<vmem>>) attributes {dimension_semantics = [#tpu.dimension_semantics<parallel>], iteration_bounds = array<i64: 2>, scalar_prefetch = 0 : i64, scratch_operands = 0 : i64, tpu.core_type = #tpu.core_type<tc>, window_params = [{transform_indices = @transform_0, window_bounds = array<i64: 1, 8, 256>}, {transform_indices = @transform_1, window_bounds = array<i64: 1, 4, 1024>}, {pipeline_mode = #tpu.pipeline_mode<synchronous>, transform_indices = @transform_2, window_bounds = array<i64: 4, 8>}, {pipeline_mode = #tpu.pipeline_mode<synchronous>, transform_indices = @transform_3, window_bounds = array<i64: 256, 1024>}, {pipeline_mode = #tpu.pipeline_mode<synchronous>, transform_indices = @transform_4, window_bounds = array<i64: 8, 72>}, {pipeline_mode = #tpu.pipeline_mode<synchronous>, transform_indices = @transform_5, window_bounds = array<i64: 8, 72>}, {pipeline_mode = #tpu.pipeline_mode<synchronous>, transform_indices = @transform_6, window_bounds = array<i64: 8, 5>}, {pipeline_mode = #tpu.pipeline_mode<synchronous>, transform_indices = @transform_7, window_bounds = array<i64: 9, 1024>}, {transform_indices = @transform_8, window_bounds = array<i64: 1, 8, 1024>}]} {
    %c0 = arith.constant 0 : index
    %c0_0 = arith.constant 0 : index
    %0 = vector.load %arg7[%c0, %c0_0] : memref<8x5xf32, #tpu.memory_space<vmem>>, vector<8x5xf32>
    %1 = vector.extract_strided_slice %0 {offsets = [0, 0], sizes = [4, 1], strides = [1, 1]} : vector<8x5xf32> to vector<4x1xf32>
    %2 = vector.extract_strided_slice %0 {offsets = [0, 1], sizes = [8, 1], strides = [1, 1]} : vector<8x5xf32> to vector<8x1xf32>
    %3 = vector.extract_strided_slice %0 {offsets = [0, 2], sizes = [8, 1], strides = [1, 1]} : vector<8x5xf32> to vector<8x1xf32>
    %4 = vector.extract_strided_slice %0 {offsets = [0, 3], sizes = [8, 1], strides = [1, 1]} : vector<8x5xf32> to vector<8x1xf32>
    %5 = vector.extract_strided_slice %0 {offsets = [0, 4], sizes = [8, 1], strides = [1, 1]} : vector<8x5xf32> to vector<8x1xf32>
    %c0_1 = arith.constant 0 : index
    %c0_2 = arith.constant 0 : index
    %6 = vector.load %arg8[%c0_1, %c0_2] : memref<9x1024xf32, #tpu.memory_space<vmem>>, vector<9x1024xf32>
    %c0_3 = arith.constant 0 : index
    %c0_4 = arith.constant 0 : index
    %7 = vector.load %arg3[%c0_3, %c0_4] : memref<4x8xf32, #tpu.memory_space<vmem>>, vector<4x8xf32>
    %c0_5 = arith.constant 0 : index
    %c0_6 = arith.constant 0 : index
    %8 = vector.load %arg4[%c0_5, %c0_6] : memref<256x1024xf32, #tpu.memory_space<vmem>>, vector<256x1024xf32>
    %c0_7 = arith.constant 0 : index
    %c0_8 = arith.constant 0 : index
    %c0_9 = arith.constant 0 : index
    %9 = vector.load %arg1[%c0_7, %c0_8, %c0_9] : memref<1x8x256xf32, #tpu.memory_space<vmem>>, vector<1x8x256xf32>
    %10 = vector.shape_cast %9 : vector<1x8x256xf32> to vector<8x256xf32>
    %cst = arith.constant dense<0.000000e+00> : vector<4x256xf32>
    %11 = tpu.matmul %7, %10, %cst {dimension_numbers = #tpu.dot_dimension_numbers<[1], [0], [0], [1], [0, 0, 1, 1], [], []>} : vector<4x8xf32>, vector<8x256xf32>, vector<4x256xf32> -> vector<4x256xf32>
    %12 = vector.broadcast %1 : vector<4x1xf32> to vector<4x256xf32>
    %13 = arith.addf %11, %12 : vector<4x256xf32>
    %cst_10 = arith.constant dense<0.000000e+00> : vector<4x1024xf32>
    %14 = tpu.matmul %13, %8, %cst_10 {dimension_numbers = #tpu.dot_dimension_numbers<[1], [0], [0], [1], [0, 0, 1, 1], [], []>} : vector<4x256xf32>, vector<256x1024xf32>, vector<4x1024xf32> -> vector<4x1024xf32>
    %c0_11 = arith.constant 0 : index
    %c0_12 = arith.constant 0 : index
    %c0_13 = arith.constant 0 : index
    %15 = vector.load %arg2[%c0_11, %c0_12, %c0_13] : memref<1x4x1024xf32, #tpu.memory_space<vmem>>, vector<1x4x1024xf32>
    %16 = vector.shape_cast %15 : vector<1x4x1024xf32> to vector<4x1024xf32>
    %17 = tpu.concatenate %16, %14 in 0 : vector<4x1024xf32>, vector<4x1024xf32> -> vector<8x1024xf32>
    %c33_i32 = arith.constant 33 : i32
    %18 = tpu.dynamic_rotate %17 by %c33_i32 dim 1 : vector<8x1024xf32>, i32 -> vector<8x1024xf32>
    %19 = vector.extract_strided_slice %6 {offsets = [0, 0], sizes = [1, 1024], strides = [1, 1]} : vector<9x1024xf32> to vector<1x1024xf32>
    %20 = vector.broadcast %19 : vector<1x1024xf32> to vector<8x1024xf32>
    %21 = arith.mulf %18, %20 : vector<8x1024xf32>
    %c32_i32 = arith.constant 32 : i32
    %22 = tpu.dynamic_rotate %17 by %c32_i32 dim 1 : vector<8x1024xf32>, i32 -> vector<8x1024xf32>
    %23 = vector.extract_strided_slice %6 {offsets = [1, 0], sizes = [1, 1024], strides = [1, 1]} : vector<9x1024xf32> to vector<1x1024xf32>
    %24 = vector.broadcast %23 : vector<1x1024xf32> to vector<8x1024xf32>
    %25 = arith.mulf %22, %24 : vector<8x1024xf32>
    %c31_i32 = arith.constant 31 : i32
    %26 = tpu.dynamic_rotate %17 by %c31_i32 dim 1 : vector<8x1024xf32>, i32 -> vector<8x1024xf32>
    %27 = vector.extract_strided_slice %6 {offsets = [2, 0], sizes = [1, 1024], strides = [1, 1]} : vector<9x1024xf32> to vector<1x1024xf32>
    %28 = vector.broadcast %27 : vector<1x1024xf32> to vector<8x1024xf32>
    %29 = arith.mulf %26, %28 : vector<8x1024xf32>
    %c1_i32 = arith.constant 1 : i32
    %30 = tpu.dynamic_rotate %17 by %c1_i32 dim 1 : vector<8x1024xf32>, i32 -> vector<8x1024xf32>
    %31 = vector.extract_strided_slice %6 {offsets = [3, 0], sizes = [1, 1024], strides = [1, 1]} : vector<9x1024xf32> to vector<1x1024xf32>
    %32 = vector.broadcast %31 : vector<1x1024xf32> to vector<8x1024xf32>
    %33 = arith.mulf %30, %32 : vector<8x1024xf32>
    %c1023_i32 = arith.constant 1023 : i32
    %34 = tpu.dynamic_rotate %17 by %c1023_i32 dim 1 : vector<8x1024xf32>, i32 -> vector<8x1024xf32>
    %35 = vector.extract_strided_slice %6 {offsets = [5, 0], sizes = [1, 1024], strides = [1, 1]} : vector<9x1024xf32> to vector<1x1024xf32>
    %36 = vector.broadcast %35 : vector<1x1024xf32> to vector<8x1024xf32>
    %37 = arith.mulf %34, %36 : vector<8x1024xf32>
    %c993_i32 = arith.constant 993 : i32
    %38 = tpu.dynamic_rotate %17 by %c993_i32 dim 1 : vector<8x1024xf32>, i32 -> vector<8x1024xf32>
    %39 = vector.extract_strided_slice %6 {offsets = [6, 0], sizes = [1, 1024], strides = [1, 1]} : vector<9x1024xf32> to vector<1x1024xf32>
    %40 = vector.broadcast %39 : vector<1x1024xf32> to vector<8x1024xf32>
    %41 = arith.mulf %38, %40 : vector<8x1024xf32>
    %c992_i32 = arith.constant 992 : i32
    %42 = tpu.dynamic_rotate %17 by %c992_i32 dim 1 : vector<8x1024xf32>, i32 -> vector<8x1024xf32>
    %43 = vector.extract_strided_slice %6 {offsets = [7, 0], sizes = [1, 1024], strides = [1, 1]} : vector<9x1024xf32> to vector<1x1024xf32>
    %44 = vector.broadcast %43 : vector<1x1024xf32> to vector<8x1024xf32>
    %45 = arith.mulf %42, %44 : vector<8x1024xf32>
    %c991_i32 = arith.constant 991 : i32
    %46 = tpu.dynamic_rotate %17 by %c991_i32 dim 1 : vector<8x1024xf32>, i32 -> vector<8x1024xf32>
    %47 = vector.extract_strided_slice %6 {offsets = [8, 0], sizes = [1, 1024], strides = [1, 1]} : vector<9x1024xf32> to vector<1x1024xf32>
    %48 = vector.broadcast %47 : vector<1x1024xf32> to vector<8x1024xf32>
    %49 = arith.mulf %46, %48 : vector<8x1024xf32>
    %50 = tpu.concatenate %21, %25, %29, %33, %17, %37, %41, %45, %49 in 0 : vector<8x1024xf32>, vector<8x1024xf32>, vector<8x1024xf32>, vector<8x1024xf32>, vector<8x1024xf32>, vector<8x1024xf32>, vector<8x1024xf32>, vector<8x1024xf32>, vector<8x1024xf32> -> vector<72x1024xf32>
    %c0_14 = arith.constant 0 : index
    %c0_15 = arith.constant 0 : index
    %51 = vector.load %arg5[%c0_14, %c0_15] : memref<8x72xf32, #tpu.memory_space<vmem>>, vector<8x72xf32>
    %cst_16 = arith.constant dense<0.000000e+00> : vector<8x1024xf32>
    %52 = tpu.matmul %51, %50, %cst_16 {dimension_numbers = #tpu.dot_dimension_numbers<[1], [0], [0], [1], [0, 0, 1, 1], [], []>} : vector<8x72xf32>, vector<72x1024xf32>, vector<8x1024xf32> -> vector<8x1024xf32>
    %53 = vector.broadcast %2 : vector<8x1xf32> to vector<8x1024xf32>
    %54 = arith.mulf %52, %53 : vector<8x1024xf32>
    %55 = vector.broadcast %3 : vector<8x1xf32> to vector<8x1024xf32>
    %56 = arith.addf %54, %55 : vector<8x1024xf32>
    %cst_17 = arith.constant 0.000000e+00 : f32
    %57 = vector.broadcast %cst_17 : f32 to vector<8x1024xf32>
    %58 = arith.cmpf ogt, %56, %57 : vector<8x1024xf32>
    %cst_18 = arith.constant 0.00999999977 : f32
    %59 = vector.broadcast %cst_18 : f32 to vector<8x1024xf32>
    %60 = arith.mulf %59, %56 : vector<8x1024xf32>
    %61 = arith.select %58, %56, %60 : vector<8x1024xi1>, vector<8x1024xf32>
    %c33_i32_19 = arith.constant 33 : i32
    %62 = tpu.dynamic_rotate %61 by %c33_i32_19 dim 1 : vector<8x1024xf32>, i32 -> vector<8x1024xf32>
    %63 = vector.extract_strided_slice %6 {offsets = [0, 0], sizes = [1, 1024], strides = [1, 1]} : vector<9x1024xf32> to vector<1x1024xf32>
    %64 = vector.broadcast %63 : vector<1x1024xf32> to vector<8x1024xf32>
    %65 = arith.mulf %62, %64 : vector<8x1024xf32>
    %c32_i32_20 = arith.constant 32 : i32
    %66 = tpu.dynamic_rotate %61 by %c32_i32_20 dim 1 : vector<8x1024xf32>, i32 -> vector<8x1024xf32>
    %67 = vector.extract_strided_slice %6 {offsets = [1, 0], sizes = [1, 1024], strides = [1, 1]} : vector<9x1024xf32> to vector<1x1024xf32>
    %68 = vector.broadcast %67 : vector<1x1024xf32> to vector<8x1024xf32>
    %69 = arith.mulf %66, %68 : vector<8x1024xf32>
    %c31_i32_21 = arith.constant 31 : i32
    %70 = tpu.dynamic_rotate %61 by %c31_i32_21 dim 1 : vector<8x1024xf32>, i32 -> vector<8x1024xf32>
    %71 = vector.extract_strided_slice %6 {offsets = [2, 0], sizes = [1, 1024], strides = [1, 1]} : vector<9x1024xf32> to vector<1x1024xf32>
    %72 = vector.broadcast %71 : vector<1x1024xf32> to vector<8x1024xf32>
    %73 = arith.mulf %70, %72 : vector<8x1024xf32>
    %c1_i32_22 = arith.constant 1 : i32
    %74 = tpu.dynamic_rotate %61 by %c1_i32_22 dim 1 : vector<8x1024xf32>, i32 -> vector<8x1024xf32>
    %75 = vector.extract_strided_slice %6 {offsets = [3, 0], sizes = [1, 1024], strides = [1, 1]} : vector<9x1024xf32> to vector<1x1024xf32>
    %76 = vector.broadcast %75 : vector<1x1024xf32> to vector<8x1024xf32>
    %77 = arith.mulf %74, %76 : vector<8x1024xf32>
    %c1023_i32_23 = arith.constant 1023 : i32
    %78 = tpu.dynamic_rotate %61 by %c1023_i32_23 dim 1 : vector<8x1024xf32>, i32 -> vector<8x1024xf32>
    %79 = vector.extract_strided_slice %6 {offsets = [5, 0], sizes = [1, 1024], strides = [1, 1]} : vector<9x1024xf32> to vector<1x1024xf32>
    %80 = vector.broadcast %79 : vector<1x1024xf32> to vector<8x1024xf32>
    %81 = arith.mulf %78, %80 : vector<8x1024xf32>
    %c993_i32_24 = arith.constant 993 : i32
    %82 = tpu.dynamic_rotate %61 by %c993_i32_24 dim 1 : vector<8x1024xf32>, i32 -> vector<8x1024xf32>
    %83 = vector.extract_strided_slice %6 {offsets = [6, 0], sizes = [1, 1024], strides = [1, 1]} : vector<9x1024xf32> to vector<1x1024xf32>
    %84 = vector.broadcast %83 : vector<1x1024xf32> to vector<8x1024xf32>
    %85 = arith.mulf %82, %84 : vector<8x1024xf32>
    %c992_i32_25 = arith.constant 992 : i32
    %86 = tpu.dynamic_rotate %61 by %c992_i32_25 dim 1 : vector<8x1024xf32>, i32 -> vector<8x1024xf32>
    %87 = vector.extract_strided_slice %6 {offsets = [7, 0], sizes = [1, 1024], strides = [1, 1]} : vector<9x1024xf32> to vector<1x1024xf32>
    %88 = vector.broadcast %87 : vector<1x1024xf32> to vector<8x1024xf32>
    %89 = arith.mulf %86, %88 : vector<8x1024xf32>
    %c991_i32_26 = arith.constant 991 : i32
    %90 = tpu.dynamic_rotate %61 by %c991_i32_26 dim 1 : vector<8x1024xf32>, i32 -> vector<8x1024xf32>
    %91 = vector.extract_strided_slice %6 {offsets = [8, 0], sizes = [1, 1024], strides = [1, 1]} : vector<9x1024xf32> to vector<1x1024xf32>
    %92 = vector.broadcast %91 : vector<1x1024xf32> to vector<8x1024xf32>
    %93 = arith.mulf %90, %92 : vector<8x1024xf32>
    %94 = tpu.concatenate %65, %69, %73, %77, %61, %81, %85, %89, %93 in 0 : vector<8x1024xf32>, vector<8x1024xf32>, vector<8x1024xf32>, vector<8x1024xf32>, vector<8x1024xf32>, vector<8x1024xf32>, vector<8x1024xf32>, vector<8x1024xf32>, vector<8x1024xf32> -> vector<72x1024xf32>
    %c0_27 = arith.constant 0 : index
    %c0_28 = arith.constant 0 : index
    %95 = vector.load %arg6[%c0_27, %c0_28] : memref<8x72xf32, #tpu.memory_space<vmem>>, vector<8x72xf32>
    %cst_29 = arith.constant dense<0.000000e+00> : vector<8x1024xf32>
    %96 = tpu.matmul %95, %94, %cst_29 {dimension_numbers = #tpu.dot_dimension_numbers<[1], [0], [0], [1], [0, 0, 1, 1], [], []>} : vector<8x72xf32>, vector<72x1024xf32>, vector<8x1024xf32> -> vector<8x1024xf32>
    %97 = vector.broadcast %4 : vector<8x1xf32> to vector<8x1024xf32>
    %98 = arith.mulf %96, %97 : vector<8x1024xf32>
    %99 = vector.broadcast %5 : vector<8x1xf32> to vector<8x1024xf32>
    %100 = arith.addf %98, %99 : vector<8x1024xf32>
    %cst_30 = arith.constant 0.000000e+00 : f32
    %101 = vector.broadcast %cst_30 : f32 to vector<8x1024xf32>
    %102 = arith.cmpf ogt, %100, %101 : vector<8x1024xf32>
    %cst_31 = arith.constant 0.00999999977 : f32
    %103 = vector.broadcast %cst_31 : f32 to vector<8x1024xf32>
    %104 = arith.mulf %103, %100 : vector<8x1024xf32>
    %105 = arith.select %102, %100, %104 : vector<8x1024xi1>, vector<8x1024xf32>
    %c0_32 = arith.constant 0 : index
    %c0_33 = arith.constant 0 : index
    %c0_34 = arith.constant 0 : index
    %106 = vector.load %arg9[%c0_32, %c0_33, %c0_34] : memref<1x8x1024xf32, #tpu.memory_space<vmem>>, vector<1x8x1024xf32>
    %107 = vector.shape_cast %106 : vector<1x8x1024xf32> to vector<8x1024xf32>
    %108 = vector.shape_cast %105 : vector<8x1024xf32> to vector<1x8x1024xf32>
    tpu.vector_store %arg9[%c0_32, %c0_33, %c0_34], %108 {strides = array<i32>} : memref<1x8x1024xf32, #tpu.memory_space<vmem>>, vector<1x8x1024xf32>,
    return
  }
  func.func @transform_0(%arg0: i32) -> (i32, i32, i32) {
    %c0_i32 = arith.constant 0 : i32
    %c0_i32_0 = arith.constant 0 : i32
    %c0_i32_1 = arith.constant 0 : i32
    return %arg0, %c0_i32, %c0_i32_0 : i32, i32, i32
  }
  func.func @transform_1(%arg0: i32) -> (i32, i32, i32) {
    %c0_i32 = arith.constant 0 : i32
    %c0_i32_0 = arith.constant 0 : i32
    %c0_i32_1 = arith.constant 0 : i32
    return %arg0, %c0_i32, %c0_i32_0 : i32, i32, i32
  }
  func.func @transform_2(%arg0: i32) -> (i32, i32) {
    %c0_i32 = arith.constant 0 : i32
    %c0_i32_0 = arith.constant 0 : i32
    %c0_i32_1 = arith.constant 0 : i32
    return %c0_i32, %c0_i32_0 : i32, i32
  }
  func.func @transform_3(%arg0: i32) -> (i32, i32) {
    %c0_i32 = arith.constant 0 : i32
    %c0_i32_0 = arith.constant 0 : i32
    %c0_i32_1 = arith.constant 0 : i32
    return %c0_i32, %c0_i32_0 : i32, i32
  }
  func.func @transform_4(%arg0: i32) -> (i32, i32) {
    %c0_i32 = arith.constant 0 : i32
    %c0_i32_0 = arith.constant 0 : i32
    %c0_i32_1 = arith.constant 0 : i32
    return %c0_i32, %c0_i32_0 : i32, i32
  }
  func.func @transform_5(%arg0: i32) -> (i32, i32) {
    %c0_i32 = arith.constant 0 : i32
    %c0_i32_0 = arith.constant 0 : i32
    %c0_i32_1 = arith.constant 0 : i32
    return %c0_i32, %c0_i32_0 : i32, i32
  }
  func.func @transform_6(%arg0: i32) -> (i32, i32) {
    %c0_i32 = arith.constant 0 : i32
    %c0_i32_0 = arith.constant 0 : i32
    %c0_i32_1 = arith.constant 0 : i32
    return %c0_i32, %c0_i32_0 : i32, i32
  }
  func.func @transform_7(%arg0: i32) -> (i32, i32) {
    %c0_i32 = arith.constant 0 : i32
    %c0_i32_0 = arith.constant 0 : i32
    %c0_i32_1 = arith.constant 0 : i32
    return %c0_i32, %c0_i32_0 : i32, i32
  }
  func.func @transform_8(%arg0: i32) -> (i32, i32, i32) {
    %c0_i32 = arith.constant 0 : i32
    %c0_i32_0 = arith.constant 0 : i32
    %c0_i32_1 = arith.constant 0 : i32
    return %arg0, %c0_i32, %c0_i32_0 : i32, i32, i32
  }
}

</mosaic_0001>

<llo_original>
// kernel: tpu_custom_call.1
$region0: #{tpu_custom_call.1}
  #allocation0 [shape = 'u32[]', space=smem, size = 0x4, offset = 0x4, fixed_abs, tag = 'smem constant byte address 0x4 - core index']
  #allocation1 [shape = 'u32[144,128]{1,0:T(1,128)}', space=vmem, size = 0x12000, scoped, tag = 'internal scratch']
  %s0 = inlined_call_operand.hbm [shape: f32[2,8,256], index: 0, kind: input, shape index: {}]
  %s1 = inlined_call_operand.hbm [shape: f32[2,4,1024], index: 1, kind: input, shape index: {}]
  %s2 = inlined_call_operand.hbm [shape: f32[4,8], index: 2, kind: input, shape index: {}]
  %s3 = inlined_call_operand.hbm [shape: f32[256,1024], index: 3, kind: input, shape index: {}]
  %s4 = inlined_call_operand.hbm [shape: f32[8,72], index: 4, kind: input, shape index: {}]
  %s5 = inlined_call_operand.vmem [shape: f32[8,72], index: 5, kind: input, shape index: {}]
  %s6 = inlined_call_operand.hbm [shape: f32[8,5], index: 6, kind: input, shape index: {}]
  %s7 = inlined_call_operand.hbm [shape: f32[9,1024], index: 7, kind: input, shape index: {}]
  %s8 = inlined_call_operand.hbm [shape: f32[2,8,1024], index: 8, kind: output, shape index: {}]
  %s9 = sld [smem:[#allocation0]]
  $region93: #{tpu_custom_call.1} parent=0
    _
  %s11 = ssub.s32 1, %s9
  %s12 = scalar_select 0, %s11, %s9
  $region1: #{tpu_custom_call.1} parent=0
    #allocation2 [shape = 'u8[16384]{0}', space=vmem, size = 0x4000, scoped, tag = 'input window, operand 0']
    #allocation3 [shape = 's32[2]{0}', space=sflag, size = 0x8, scoped, tag = 'scoped memory for tpu_custom_call.1']
    #allocation4 [shape = 's32[2]{0}', space=sflag, size = 0x8, scoped, tag = 'scoped memory for tpu_custom_call.1']
    #allocation5 [shape = 'u8[32768]{0}', space=vmem, size = 0x8000, scoped, tag = 'input window, operand 1']
    #allocation6 [shape = 's32[2]{0}', space=sflag, size = 0x8, scoped, tag = 'scoped memory for tpu_custom_call.1']
    #allocation7 [shape = 'u8[2048]{0}', space=vmem, size = 0x800, scoped, tag = 'input window, operand 2, single buffered']
    #allocation8 [shape = 'u8[1048576]{0}', space=vmem, size = 0x100000, scoped, tag = 'input window, operand 3, single buffered']
    #allocation9 [shape = 's32[1]{0}', space=sflag, size = 0x4, scoped, tag = 'scoped memory for tpu_custom_call.1']
    #allocation10 [shape = 'u8[4096]{0}', space=vmem, size = 0x1000, scoped, tag = 'input window, operand 4, single buffered']
    #allocation11 [shape = 'u8[4096]{0}', space=vmem, size = 0x1000, scoped, tag = 'input window, operand 6, single buffered']
    #allocation12 [shape = 's32[1]{0}', space=sflag, size = 0x4, scoped, tag = 'scoped memory for tpu_custom_call.1']
    #allocation13 [shape = 'u8[65536]{0}', space=vmem, size = 0x10000, scoped, tag = 'input window, operand 7, single buffered']
    #allocation14 [shape = 'u8[65536]{0}', space=vmem, size = 0x10000, scoped, tag = 'output window, operand 0']
    %13 = vsyncpa [#allocation3], 0
    %s14 = scalar_lea.sflag [#allocation3], 1
    %15 = vsyncpa %s14, 0
    %16 = vsyncpa [#allocation6], 0
    %s17 = scalar_lea.sflag [#allocation6], 1
    %18 = vsyncpa %s17, 0
    %19 = vsyncpa [#allocation9], 0
    %20 = vsyncpa [#allocation12], 0
    %21 = vsyncpa [#allocation4], 0
    %s22 = scalar_lea.sflag [#allocation4], 1
    %23 = vsyncpa %s22, 0
    loop: start=0, step=1, limit=4
    $region2: #{tpu_custom_call.1} parent=1 // loop_pre_header
      _
    $region3: #{tpu_custom_call.1} parent=1 // loop_header
      %s25 = sphi 0, %s29
      %p26 = scmp.ge.s32.totalorder %s25, 4
      %s35 = sphi 0, %s37
      %s38 = sphi 0, %s35
      %s39 = sphi 0, %s38
      %s55 = sphi 0, %s39
      %s61 = sphi 0, %s63
      %s64 = sphi 0, %s61
      %s65 = sphi 0, %s64
      %s81 = sphi 0, %s65
      %s85 = sphi 0, %s85
      %s87 = sphi 0, %s85
      %s88 = sphi 0, %s87
      %s102 = sphi 0, %s88
      %s106 = sphi 0, %s106
      %s108 = sphi 0, %s106
      %s109 = sphi 0, %s108
      %s123 = sphi 0, %s109
      %s127 = sphi 0, %s127
      %s129 = sphi 0, %s127
      %s130 = sphi 0, %s129
      %s144 = sphi 0, %s130
      %s148 = sphi 0, %s148
      %s150 = sphi 0, %s148
      %s151 = sphi 0, %s150
      %s165 = sphi 0, %s151
      %s169 = sphi 0, %s169
      %s171 = sphi 0, %s169
      %s172 = sphi 0, %s171
      %s186 = sphi 0, %s172
      %s190 = sphi 0, %s190
      %s192 = sphi 0, %s190
      %s193 = sphi 0, %s192
      %s207 = sphi 0, %s193
      %s213 = sphi 0, %s215
      %s216 = sphi 0, %s213
      %s217 = sphi 0, %s216
      %s233 = sphi 0, %s217
    $region4: #{tpu_custom_call.1} parent=1 // loop_header_branch
      %28 = sbr.rel (%p26) target = $region8
    $region5: #{tpu_custom_call.1} parent=1 // loop_body
      %s30 = ssub.s32 %s25, 1
      %s31 = ssub.s32 %s25, 2
      %s32 = sadd.s32 %s25, 1
      %s33 = ssub.s32 %s25, %s32
      %p34 = scmp.eq.s32.totalorder %s33, 0
      %s36 = sadd.s32 %s35, 1
      %s37 = scalar_select %p34, %s35, %s36
      %p40 = pneg %p34
      %p41 = scmp.eq.s32.totalorder %s25, 1
      %p42 = por %p40, %p41
      %p43 = scmp.ne.s32.totalorder %s35, %s38
      %p44 = scmp.eq.s32.totalorder %s25, 0
      %p45 = por %p43, %p44
      %p46 = scmp.ne.s32.totalorder %s35, %s38
      %p47 = scmp.eq.s32.totalorder %s30, 1
      %p48 = por %p46, %p47
      %p49 = scmp.ne.s32.totalorder %s38, %s39
      %p50 = scmp.eq.s32.totalorder %s30, 0
      %p51 = por %p49, %p50
      %p52 = scmp.ne.s32.totalorder %s38, %s39
      %p53 = scmp.eq.s32.totalorder %s31, 1
      %p54 = por %p52, %p53
      %p56 = scmp.ne.s32.totalorder %s39, %s55
      %p57 = scmp.eq.s32.totalorder %s31, 0
      %p58 = por %p56, %p57
      %s59 = ssub.s32 %s25, %s32
      %p60 = scmp.eq.s32.totalorder %s59, 0
      %s62 = sadd.s32 %s61, 1
      %s63 = scalar_select %p60, %s61, %s62
      %p66 = pneg %p60
      %p67 = scmp.eq.s32.totalorder %s25, 1
      %p68 = por %p66, %p67
      %p69 = scmp.ne.s32.totalorder %s61, %s64
      %p70 = scmp.eq.s32.totalorder %s25, 0
      %p71 = por %p69, %p70
      %p72 = scmp.ne.s32.totalorder %s61, %s64
      %p73 = scmp.eq.s32.totalorder %s30, 1
      %p74 = por %p72, %p73
      %p75 = scmp.ne.s32.totalorder %s64, %s65
      %p76 = scmp.eq.s32.totalorder %s30, 0
      %p77 = por %p75, %p76
      %p78 = scmp.ne.s32.totalorder %s64, %s65
      %p79 = scmp.eq.s32.totalorder %s31, 1
      %p80 = por %p78, %p79
      %p82 = scmp.ne.s32.totalorder %s65, %s81
      %p83 = scmp.eq.s32.totalorder %s31, 0
      %p84 = por %p82, %p83
      %s86 = sadd.s32 %s85, 1
      %p89 = scmp.eq.s32.totalorder %s25, 1
      %p90 = scmp.ne.s32.totalorder %s85, %s87
      %p91 = scmp.eq.s32.totalorder %s25, 0
      %p92 = por %p90, %p91
      %p93 = scmp.ne.s32.totalorder %s85, %s87
      %p94 = scmp.eq.s32.totalorder %s30, 1
      %p95 = por %p93, %p94
      %p96 = scmp.ne.s32.totalorder %s87, %s88
      %p97 = scmp.eq.s32.totalorder %s30, 0
      %p98 = por %p96, %p97
      %p99 = scmp.ne.s32.totalorder %s87, %s88
      %p100 = scmp.eq.s32.totalorder %s31, 1
      %p101 = por %p99, %p100
      %p103 = scmp.ne.s32.totalorder %s88, %s102
      %p104 = scmp.eq.s32.totalorder %s31, 0
      %p105 = por %p103, %p104
      %s107 = sadd.s32 %s106, 1
      %p110 = scmp.eq.s32.totalorder %s25, 1
      %p111 = scmp.ne.s32.totalorder %s106, %s108
      %p112 = scmp.eq.s32.totalorder %s25, 0
      %p113 = por %p111, %p112
      %p114 = scmp.ne.s32.totalorder %s106, %s108
      %p115 = scmp.eq.s32.totalorder %s30, 1
      %p116 = por %p114, %p115
      %p117 = scmp.ne.s32.totalorder %s108, %s109
      %p118 = scmp.eq.s32.totalorder %s30, 0
      %p119 = por %p117, %p118
      %p120 = scmp.ne.s32.totalorder %s108, %s109
      %p121 = scmp.eq.s32.totalorder %s31, 1
      %p122 = por %p120, %p121
      %p124 = scmp.ne.s32.totalorder %s109, %s123
      %p125 = scmp.eq.s32.totalorder %s31, 0
      %p126 = por %p124, %p125
      %s128 = sadd.s32 %s127, 1
      %p131 = scmp.eq.s32.totalorder %s25, 1
      %p132 = scmp.ne.s32.totalorder %s127, %s129
      %p133 = scmp.eq.s32.totalorder %s25, 0
      %p134 = por %p132, %p133
      %p135 = scmp.ne.s32.totalorder %s127, %s129
      %p136 = scmp.eq.s32.totalorder %s30, 1
      %p137 = por %p135, %p136
      %p138 = scmp.ne.s32.totalorder %s129, %s130
      %p139 = scmp.eq.s32.totalorder %s30, 0
      %p140 = por %p138, %p139
      %p141 = scmp.ne.s32.totalorder %s129, %s130
      %p142 = scmp.eq.s32.totalorder %s31, 1
      %p143 = por %p141, %p142
      %p145 = scmp.ne.s32.totalorder %s130, %s144
      %p146 = scmp.eq.s32.totalorder %s31, 0
      %p147 = por %p145, %p146
      %s149 = sadd.s32 %s148, 1
      %p152 = scmp.eq.s32.totalorder %s25, 1
      %p153 = scmp.ne.s32.totalorder %s148, %s150
      %p154 = scmp.eq.s32.totalorder %s25, 0
      %p155 = por %p153, %p154
      %p156 = scmp.ne.s32.totalorder %s148, %s150
      %p157 = scmp.eq.s32.totalorder %s30, 1
      %p158 = por %p156, %p157
      %p159 = scmp.ne.s32.totalorder %s150, %s151
      %p160 = scmp.eq.s32.totalorder %s30, 0
      %p161 = por %p159, %p160
      %p162 = scmp.ne.s32.totalorder %s150, %s151
      %p163 = scmp.eq.s32.totalorder %s31, 1
      %p164 = por %p162, %p163
      %p166 = scmp.ne.s32.totalorder %s151, %s165
      %p167 = scmp.eq.s32.totalorder %s31, 0
      %p168 = por %p166, %p167
      %s170 = sadd.s32 %s169, 1
      %p173 = scmp.eq.s32.totalorder %s25, 1
      %p174 = scmp.ne.s32.totalorder %s169, %s171
      %p175 = scmp.eq.s32.totalorder %s25, 0
      %p176 = por %p174, %p175
      %p177 = scmp.ne.s32.totalorder %s169, %s171
      %p178 = scmp.eq.s32.totalorder %s30, 1
      %p179 = por %p177, %p178
      %p180 = scmp.ne.s32.totalorder %s171, %s172
      %p181 = scmp.eq.s32.totalorder %s30, 0
      %p182 = por %p180, %p181
      %p183 = scmp.ne.s32.totalorder %s171, %s172
      %p184 = scmp.eq.s32.totalorder %s31, 1
      %p185 = por %p183, %p184
      %p187 = scmp.ne.s32.totalorder %s172, %s186
      %p188 = scmp.eq.s32.totalorder %s31, 0
      %p189 = por %p187, %p188
      %s191 = sadd.s32 %s190, 1
      %p194 = scmp.eq.s32.totalorder %s25, 1
      %p195 = scmp.ne.s32.totalorder %s190, %s192
      %p196 = scmp.eq.s32.totalorder %s25, 0
      %p197 = por %p195, %p196
      %p198 = scmp.ne.s32.totalorder %s190, %s192
      %p199 = scmp.eq.s32.totalorder %s30, 1
      %p200 = por %p198, %p199
      %p201 = scmp.ne.s32.totalorder %s192, %s193
      %p202 = scmp.eq.s32.totalorder %s30, 0
      %p203 = por %p201, %p202
      %p204 = scmp.ne.s32.totalorder %s192, %s193
      %p205 = scmp.eq.s32.totalorder %s31, 1
      %p206 = por %p204, %p205
      %p208 = scmp.ne.s32.totalorder %s193, %s207
      %p209 = scmp.eq.s32.totalorder %s31, 0
      %p210 = por %p208, %p209
      %s211 = ssub.s32 %s25, %s32
      %p212 = scmp.eq.s32.totalorder %s211, 0
      %s214 = sadd.s32 %s213, 1
      %s215 = scalar_select %p212, %s213, %s214
      %p218 = pneg %p212
      %p219 = scmp.eq.s32.totalorder %s25, 1
      %p220 = por %p218, %p219
      %p221 = scmp.ne.s32.totalorder %s213, %s216
      %p222 = scmp.eq.s32.totalorder %s25, 0
      %p223 = por %p221, %p222
      %p224 = scmp.ne.s32.totalorder %s213, %s216
      %p225 = scmp.eq.s32.totalorder %s30, 1
      %p226 = por %p224, %p225
      %p227 = scmp.ne.s32.totalorder %s216, %s217
      %p228 = scmp.eq.s32.totalorder %s30, 0
      %p229 = por %p227, %p228
      %p230 = scmp.ne.s32.totalorder %s216, %s217
      %p231 = scmp.eq.s32.totalorder %s31, 1
      %p232 = por %p230, %p231
      %p234 = scmp.ne.s32.totalorder %s217, %s233
      %p235 = scmp.eq.s32.totalorder %s31, 0
      %p236 = por %p234, %p235
      %p237 = scmp.le.s32.totalorder 1, %s25
      %p238 = scmp.lt.s32.totalorder %s25, 3
      %p239 = pnand %p237, %p238
      %p240 = pneg %p239
      // Predicated region
      $region9: #{tpu_custom_call.1} parent=5 // pred_check
        _
      $region10: #{tpu_custom_call.1} parent=5 // pred_check_branch
        %242 = sbr.rel (%p239) target = $region12
      $region11: #{tpu_custom_call.1} parent=5 // pred_region
        %s243 = ssub.s32 %s25, 1
        // Predicated region
        $region13: #{tpu_custom_call.1} parent=11 // pred_check
          %p244 = pneg %p98
        $region14: #{tpu_custom_call.1} parent=11 // pred_check_branch
          %246 = sbr.rel (%p244) target = $region16
        $region15: #{tpu_custom_call.1} parent=11 // pred_region
          %s248 = ssub.s32 64, 64
          %249 = vsyncadd [#allocation6], %s248
          %s251 = sshll.u32 [#allocation7], 4
          %s252 = int_to_ptr.vmem [resolvable:$true] %s251
          %254 = dma.hbm_to_vmem [thread:$0]  %s2, 64, %s252, [#allocation6]
        $region16: #{tpu_custom_call.1} parent=11 // pred_fallthru
          _
        // Predicated region
        $region17: #{tpu_custom_call.1} parent=11 // pred_check
          %p255 = pneg %p119
        $region18: #{tpu_custom_call.1} parent=11 // pred_check_branch
          %257 = sbr.rel (%p255) target = $region20
        $region19: #{tpu_custom_call.1} parent=11 // pred_region
          %s259 = ssub.s32 32768, 32768
          %260 = vsyncadd [#allocation9], %s259
          %s261 = sshll.u32 [#allocation8], 4
          %s262 = int_to_ptr.vmem [resolvable:$true] %s261
          %267 = dma.hbm_to_vmem [thread:$0]  %s3, 32768, %s262, [#allocation9], 1024, 1024, 64
        $region20: #{tpu_custom_call.1} parent=11 // pred_fallthru
          _
        // Predicated region
        $region21: #{tpu_custom_call.1} parent=11 // pred_check
          %p268 = pneg %p140
        $region22: #{tpu_custom_call.1} parent=11 // pred_check_branch
          %270 = sbr.rel (%p268) target = $region24
        $region23: #{tpu_custom_call.1} parent=11 // pred_region
          %s272 = ssub.s32 128, 128
          %273 = vsyncadd [#allocation9], %s272
          %s275 = sshll.u32 [#allocation10], 4
          %s276 = int_to_ptr.vmem [resolvable:$true] %s275
          %278 = dma.hbm_to_vmem [thread:$0]  %s4, 128, %s276, [#allocation9]
        $region24: #{tpu_custom_call.1} parent=11 // pred_fallthru
          _
        // Predicated region
        $region25: #{tpu_custom_call.1} parent=11 // pred_check
          %p279 = pneg %p161
        $region26: #{tpu_custom_call.1} parent=11 // pred_check_branch
          %281 = sbr.rel (%p279) target = $region28
        $region27: #{tpu_custom_call.1} parent=11 // pred_region
          _
        $region28: #{tpu_custom_call.1} parent=11 // pred_fallthru
          _
        // Predicated region
        $region29: #{tpu_custom_call.1} parent=11 // pred_check
          %p282 = pneg %p182
        $region30: #{tpu_custom_call.1} parent=11 // pred_check_branch
          %284 = sbr.rel (%p282) target = $region32
        $region31: #{tpu_custom_call.1} parent=11 // pred_region
          %s286 = ssub.s32 128, 128
          %287 = vsyncadd [#allocation12], %s286
          %s289 = sshll.u32 [#allocation11], 4
          %s290 = int_to_ptr.vmem [resolvable:$true] %s289
          %292 = dma.hbm_to_vmem [thread:$0]  %s6, 128, %s290, [#allocation12]
        $region32: #{tpu_custom_call.1} parent=11 // pred_fallthru
          _
        // Predicated region
        $region33: #{tpu_custom_call.1} parent=11 // pred_check
          %p293 = pneg %p203
        $region34: #{tpu_custom_call.1} parent=11 // pred_check_branch
          %295 = sbr.rel (%p293) target = $region36
        $region35: #{tpu_custom_call.1} parent=11 // pred_region
          %s297 = ssub.s32 2048, 2048
          %298 = vsyncadd [#allocation12], %s297
          %s299 = sshll.u32 [#allocation13], 4
          %s300 = int_to_ptr.vmem [resolvable:$true] %s299
          %305 = dma.hbm_to_vmem [thread:$0]  %s7, 2048, %s300, [#allocation12], 1024, 1024, 64
        $region36: #{tpu_custom_call.1} parent=11 // pred_fallthru
          _
      $region12: #{tpu_custom_call.1} parent=5 // pred_fallthru
        _
      %p306 = scmp.lt.s32.totalorder %s25, 2
      // Predicated region
      $region37: #{tpu_custom_call.1} parent=5 // pred_check
        %p307 = pneg %p306
      $region38: #{tpu_custom_call.1} parent=5 // pred_check_branch
        %309 = sbr.rel (%p307) target = $region40
      $region39: #{tpu_custom_call.1} parent=5 // pred_region
        // Predicated region
        $region41: #{tpu_custom_call.1} parent=39 // pred_check
          %p310 = pneg %p45
        $region42: #{tpu_custom_call.1} parent=39 // pred_check_branch
          %312 = sbr.rel (%p310) target = $region44
        $region43: #{tpu_custom_call.1} parent=39 // pred_region
          %s313 = sand.u32 %s35, 1
          %s314 = scalar_lea.sflag [#allocation3], %s313
          %s315 = sand.u32 %s35, 1
          %s316 = smul.addr %s315, 16
          %s317 = scalar_lea.vmem [#allocation2], %s316
          %s319 = ssub.s32 256, 256
          %320 = vsyncadd %s314, %s319
          %s321 = smul.addr %s25, 2
          %s322 = smul.addr %s321, 128
          %s323 = scalar_lea.hbm %s0, %s322
          %s325 = sshll.u32 %s317, 4
          %s326 = int_to_ptr.vmem [resolvable:$true] %s325
          %328 = dma.hbm_to_vmem [thread:$0]  %s323, 256, %s326, %s314
        $region44: #{tpu_custom_call.1} parent=39 // pred_fallthru
          _
        // Predicated region
        $region45: #{tpu_custom_call.1} parent=39 // pred_check
          %p329 = pneg %p71
        $region46: #{tpu_custom_call.1} parent=39 // pred_check_branch
          %331 = sbr.rel (%p329) target = $region48
        $region47: #{tpu_custom_call.1} parent=39 // pred_region
          %s332 = sand.u32 %s25, 1
          %s333 = scalar_lea.sflag [#allocation6], %s332
          %s334 = sand.u32 %s61, 1
          %s335 = smul.addr %s334, 32
          %s336 = scalar_lea.vmem [#allocation5], %s335
          %s338 = ssub.s32 512, 512
          %339 = vsyncadd %s333, %s338
          %s340 = smul.addr %s25, 8
          %s341 = smul.addr %s340, 64
          %s342 = scalar_lea.hbm %s1, %s341
          %s344 = sshll.u32 %s336, 4
          %s345 = int_to_ptr.vmem [resolvable:$true] %s344
          %347 = dma.hbm_to_vmem [thread:$0]  %s342, 512, %s345, %s333
        $region48: #{tpu_custom_call.1} parent=39 // pred_fallthru
          _
      $region40: #{tpu_custom_call.1} parent=5 // pred_fallthru
        _
      %p348 = scmp.le.s32.totalorder 1, %s25
      %p349 = scmp.lt.s32.totalorder %s25, 3
      %p350 = pnand %p348, %p349
      %p351 = pneg %p350
      // Predicated region
      $region49: #{tpu_custom_call.1} parent=5 // pred_check
        _
      $region50: #{tpu_custom_call.1} parent=5 // pred_check_branch
        %353 = sbr.rel (%p350) target = $region52
      $region51: #{tpu_custom_call.1} parent=5 // pred_region
        %s354 = ssub.s32 %s25, 1
        %s355 = sand.u32 %s38, 1
        %s356 = scalar_lea.sflag [#allocation3], %s355
        %s357 = sand.u32 %s38, 1
        %s358 = smul.addr %s357, 16
        %s359 = scalar_lea.vmem [#allocation2], %s358
        // Predicated region
        $region53: #{tpu_custom_call.1} parent=51 // pred_check
          %p360 = pneg %p51
        $region54: #{tpu_custom_call.1} parent=51 // pred_check_branch
          %362 = sbr.rel (%p360) target = $region56
        $region55: #{tpu_custom_call.1} parent=51 // pred_region
          %363 = dma.done %s356, 256
        $region56: #{tpu_custom_call.1} parent=51 // pred_fallthru
          _
        %s364 = sand.u32 %s30, 1
        %s365 = scalar_lea.sflag [#allocation6], %s364
        %s366 = sand.u32 %s64, 1
        %s367 = smul.addr %s366, 32
        %s368 = scalar_lea.vmem [#allocation5], %s367
        // Predicated region
        $region57: #{tpu_custom_call.1} parent=51 // pred_check
          %p369 = pneg %p77
        $region58: #{tpu_custom_call.1} parent=51 // pred_check_branch
          %371 = sbr.rel (%p369) target = $region60
        $region59: #{tpu_custom_call.1} parent=51 // pred_region
          %372 = dma.done %s365, 512
        $region60: #{tpu_custom_call.1} parent=51 // pred_fallthru
          _
        // Predicated region
        $region61: #{tpu_custom_call.1} parent=51 // pred_check
          %p373 = pneg %p98
        $region62: #{tpu_custom_call.1} parent=51 // pred_check_branch
          %375 = sbr.rel (%p373) target = $region64
        $region63: #{tpu_custom_call.1} parent=51 // pred_region
          %376 = dma.done [#allocation6], 64
        $region64: #{tpu_custom_call.1} parent=51 // pred_fallthru
          _
        // Predicated region
        $region65: #{tpu_custom_call.1} parent=51 // pred_check
          %p377 = pneg %p119
        $region66: #{tpu_custom_call.1} parent=51 // pred_check_branch
          %379 = sbr.rel (%p377) target = $region68
        $region67: #{tpu_custom_call.1} parent=51 // pred_region
          %380 = dma.done [#allocation9], 32768
        $region68: #{tpu_custom_call.1} parent=51 // pred_fallthru
          _
        // Predicated region
        $region69: #{tpu_custom_call.1} parent=51 // pred_check
          %p381 = pneg %p140
        $region70: #{tpu_custom_call.1} parent=51 // pred_check_branch
          %383 = sbr.rel (%p381) target = $region72
        $region71: #{tpu_custom_call.1} parent=51 // pred_region
          %384 = dma.done [#allocation9], 128
        $region72: #{tpu_custom_call.1} parent=51 // pred_fallthru
          _
        // Predicated region
        $region73: #{tpu_custom_call.1} parent=51 // pred_check
          %p385 = pneg %p182
        $region74: #{tpu_custom_call.1} parent=51 // pred_check_branch
          %387 = sbr.rel (%p385) target = $region76
        $region75: #{tpu_custom_call.1} parent=51 // pred_region
          %388 = dma.done [#allocation12], 128
        $region76: #{tpu_custom_call.1} parent=51 // pred_fallthru
          _
        // Predicated region
        $region77: #{tpu_custom_call.1} parent=51 // pred_check
          %p389 = pneg %p203
        $region78: #{tpu_custom_call.1} parent=51 // pred_check_branch
          %391 = sbr.rel (%p389) target = $region80
        $region79: #{tpu_custom_call.1} parent=51 // pred_region
          %392 = dma.done [#allocation12], 2048
        $region80: #{tpu_custom_call.1} parent=51 // pred_fallthru
          _
        %s393 = sand.u32 %s38, 1
        %s394 = scalar_lea.sflag [#allocation3], %s393
        %s395 = sand.u32 %s38, 1
        %s396 = smul.addr %s395, 16
        %s397 = scalar_lea.vmem [#allocation2], %s396
        %p398 = pneg %p51
        %p399 = pneg %p48
        %s400 = sand.u32 %s30, 1
        %s401 = scalar_lea.sflag [#allocation6], %s400
        %s402 = sand.u32 %s64, 1
        %s403 = smul.addr %s402, 32
        %s404 = scalar_lea.vmem [#allocation5], %s403
        %p405 = pneg %p77
        %p406 = pneg %p74
        %p407 = pneg %p98
        %p408 = pneg %p95
        %p409 = pneg %p119
        %p410 = pneg %p116
        %p411 = pneg %p140
        %p412 = pneg %p137
        %p413 = pneg %p161
        %p414 = pneg %p158
        %p415 = pneg %p182
        %p416 = pneg %p179
        %p417 = pneg %p203
        %p418 = pneg %p200
        %p419 = pneg %p229
        %p420 = pneg %p226
        %s421 = sand.u32 %s216, 1
        %s422 = scalar_lea.sflag [#allocation4], %s421
        %s423 = sand.u32 %s216, 1
        %s424 = smul.addr %s423, 64
        %s425 = scalar_lea.vmem [#allocation14], %s424
        %v426 = vld [vmem:[#allocation11] sm:$0xff]
        %v427 = vld [vmem:[#allocation13] sm:$0xff]
        %v428 = vld [vmem:[#allocation13 + $0x8] sm:$0xff]
        %v429 = vld [vmem:[#allocation13 + $0x10] sm:$0xff]
        %v430 = vld [vmem:[#allocation13 + $0x18] sm:$0xff]
        %v431 = vld [vmem:[#allocation13 + $0x20] sm:$0xff]
        %v432 = vld [vmem:[#allocation13 + $0x28] sm:$0xff]
        %v433 = vld [vmem:[#allocation13 + $0x30] sm:$0xff]
        %v434 = vld [vmem:[#allocation13 + $0x38] sm:$0xff]
        %v435 = vld [vmem:[#allocation13 + $0x40] sm:$0x1]
        %v436 = vld [vmem:[#allocation13 + $0x48] sm:$0x1]
        %v437 = vld [vmem:[#allocation13 + $0x50] sm:$0x1]
        %v438 = vld [vmem:[#allocation13 + $0x58] sm:$0x1]
        %v439 = vld [vmem:[#allocation13 + $0x60] sm:$0x1]
        %v440 = vld [vmem:[#allocation13 + $0x68] sm:$0x1]
        %v441 = vld [vmem:[#allocation13 + $0x70] sm:$0x1]
        %v442 = vld [vmem:[#allocation13 + $0x78] sm:$0x1]
        %v443 = vld [vmem:[#allocation7] sm:$0xf]
        %v444 = vld [vmem:[#allocation8] sm:$0xff]
        %v445 = vld [vmem:[#allocation8 + $0x8] sm:$0xff]
        %v446 = vld [vmem:[#allocation8 + $0x10] sm:$0xff]
        %v447 = vld [vmem:[#allocation8 + $0x18] sm:$0xff]
        %v448 = vld [vmem:[#allocation8 + $0x20] sm:$0xff]
        %v449 = vld [vmem:[#allocation8 + $0x28] sm:$0xff]
        %v450 = vld [vmem:[#allocation8 + $0x30] sm:$0xff]
        %v451 = vld [vmem:[#allocation8 + $0x38] sm:$0xff]
        %v452 = vld [vmem:[#allocation8 + $0x40] sm:$0xff]
        %v453 = vld [vmem:[#allocation8 + $0x48] sm:$0xff]
        %v454 = vld [vmem:[#allocation8 + $0x50] sm:$0xff]
        %v455 = vld [vmem:[#allocation8 + $0x58] sm:$0xff]
        %v456 = vld [vmem:[#allocation8 + $0x60] sm:$0xff]
        %v457 = vld [vmem:[#allocation8 + $0x68] sm:$0xff]
        %v458 = vld [vmem:[#allocation8 + $0x70] sm:$0xff]
        %v459 = vld [vmem:[#allocation8 + $0x78] sm:$0xff]
        %v460 = vld [vmem:[#allocation8 + $0x80] sm:$0xff]
        %v461 = vld [vmem:[#allocation8 + $0x88] sm:$0xff]
        %v462 = vld [vmem:[#allocation8 + $0x90] sm:$0xff]
        %v463 = vld [vmem:[#allocation8 + $0x98] sm:$0xff]
        %v464 = vld [vmem:[#allocation8 + $0xa0] sm:$0xff]
        %v465 = vld [vmem:[#allocation8 + $0xa8] sm:$0xff]
        %v466 = vld [vmem:[#allocation8 + $0xb0] sm:$0xff]
        %v467 = vld [vmem:[#allocation8 + $0xb8] sm:$0xff]
        %v468 = vld [vmem:[#allocation8 + $0xc0] sm:$0xff]
        %v469 = vld [vmem:[#allocation8 + $0xc8] sm:$0xff]
        %v470 = vld [vmem:[#allocation8 + $0xd0] sm:$0xff]
        %v471 = vld [vmem:[#allocation8 + $0xd8] sm:$0xff]
        %v472 = vld [vmem:[#allocation8 + $0xe0] sm:$0xff]
        %v473 = vld [vmem:[#allocation8 + $0xe8] sm:$0xff]
        %v474 = vld [vmem:[#allocation8 + $0xf0] sm:$0xff]
        %v475 = vld [vmem:[#allocation8 + $0xf8] sm:$0xff]
        %v476 = vld [vmem:[#allocation8 + $0x100] sm:$0xff]
        %v477 = vld [vmem:[#allocation8 + $0x108] sm:$0xff]
        %v478 = vld [vmem:[#allocation8 + $0x110] sm:$0xff]
        %v479 = vld [vmem:[#allocation8 + $0x118] sm:$0xff]
        %v480 = vld [vmem:[#allocation8 + $0x120] sm:$0xff]
        %v481 = vld [vmem:[#allocation8 + $0x128] sm:$0xff]
        %v482 = vld [vmem:[#allocation8 + $0x130] sm:$0xff]
        %v483 = vld [vmem:[#allocation8 + $0x138] sm:$0xff]
        %v484 = vld [vmem:[#allocation8 + $0x140] sm:$0xff]
        %v485 = vld [vmem:[#allocation8 + $0x148] sm:$0xff]
        %v486 = vld [vmem:[#allocation8 + $0x150] sm:$0xff]
        %v487 = vld [vmem:[#allocation8 + $0x158] sm:$0xff]
        %v488 = vld [vmem:[#allocation8 + $0x160] sm:$0xff]
        %v489 = vld [vmem:[#allocation8 + $0x168] sm:$0xff]
        %v490 = vld [vmem:[#allocation8 + $0x170] sm:$0xff]
        %v491 = vld [vmem:[#allocation8 + $0x178] sm:$0xff]
        %v492 = vld [vmem:[#allocation8 + $0x180] sm:$0xff]
        %v493 = vld [vmem:[#allocation8 + $0x188] sm:$0xff]
        %v494 = vld [vmem:[#allocation8 + $0x190] sm:$0xff]
        %v495 = vld [vmem:[#allocation8 + $0x198] sm:$0xff]
        %v496 = vld [vmem:[#allocation8 + $0x1a0] sm:$0xff]
        %v497 = vld [vmem:[#allocation8 + $0x1a8] sm:$0xff]
        %v498 = vld [vmem:[#allocation8 + $0x1b0] sm:$0xff]
        %v499 = vld [vmem:[#allocation8 + $0x1b8] sm:$0xff]
        %v500 = vld [vmem:[#allocation8 + $0x1c0] sm:$0xff]
        %v501 = vld [vmem:[#allocation8 + $0x1c8] sm:$0xff]
        %v502 = vld [vmem:[#allocation8 + $0x1d0] sm:$0xff]
        %v503 = vld [vmem:[#allocation8 + $0x1d8] sm:$0xff]
        %v504 = vld [vmem:[#allocation8 + $0x1e0] sm:$0xff]
        %v505 = vld [vmem:[#allocation8 + $0x1e8] sm:$0xff]
        %v506 = vld [vmem:[#allocation8 + $0x1f0] sm:$0xff]
        %v507 = vld [vmem:[#allocation8 + $0x1f8] sm:$0xff]
        %v508 = vld [vmem:[#allocation8 + $0x200] sm:$0xff]
        %v509 = vld [vmem:[#allocation8 + $0x208] sm:$0xff]
        %v510 = vld [vmem:[#allocation8 + $0x210] sm:$0xff]
        %v511 = vld [vmem:[#allocation8 + $0x218] sm:$0xff]
        %v512 = vld [vmem:[#allocation8 + $0x220] sm:$0xff]
        %v513 = vld [vmem:[#allocation8 + $0x228] sm:$0xff]
        %v514 = vld [vmem:[#allocation8 + $0x230] sm:$0xff]
        %v515 = vld [vmem:[#allocation8 + $0x238] sm:$0xff]
        %v516 = vld [vmem:[#allocation8 + $0x240] sm:$0xff]
        %v517 = vld [vmem:[#allocation8 + $0x248] sm:$0xff]
        %v518 = vld [vmem:[#allocation8 + $0x250] sm:$0xff]
        %v519 = vld [vmem:[#allocation8 + $0x258] sm:$0xff]
        %v520 = vld [vmem:[#allocation8 + $0x260] sm:$0xff]
        %v521 = vld [vmem:[#allocation8 + $0x268] sm:$0xff]
        %v522 = vld [vmem:[#allocation8 + $0x270] sm:$0xff]
        %v523 = vld [vmem:[#allocation8 + $0x278] sm:$0xff]
        %v524 = vld [vmem:[#allocation8 + $0x280] sm:$0xff]
        %v525 = vld [vmem:[#allocation8 + $0x288] sm:$0xff]
        %v526 = vld [vmem:[#allocation8 + $0x290] sm:$0xff]
        %v527 = vld [vmem:[#allocation8 + $0x298] sm:$0xff]
        %v528 = vld [vmem:[#allocation8 + $0x2a0] sm:$0xff]
        %v529 = vld [vmem:[#allocation8 + $0x2a8] sm:$0xff]
        %v530 = vld [vmem:[#allocation8 + $0x2b0] sm:$0xff]
        %v531 = vld [vmem:[#allocation8 + $0x2b8] sm:$0xff]
        %v532 = vld [vmem:[#allocation8 + $0x2c0] sm:$0xff]
        %v533 = vld [vmem:[#allocation8 + $0x2c8] sm:$0xff]
        %v534 = vld [vmem:[#allocation8 + $0x2d0] sm:$0xff]
        %v535 = vld [vmem:[#allocation8 + $0x2d8] sm:$0xff]
        %v536 = vld [vmem:[#allocation8 + $0x2e0] sm:$0xff]
        %v537 = vld [vmem:[#allocation8 + $0x2e8] sm:$0xff]
        %v538 = vld [vmem:[#allocation8 + $0x2f0] sm:$0xff]
        %v539 = vld [vmem:[#allocation8 + $0x2f8] sm:$0xff]
        %v540 = vld [vmem:[#allocation8 + $0x300] sm:$0xff]
        %v541 = vld [vmem:[#allocation8 + $0x308] sm:$0xff]
        %v542 = vld [vmem:[#allocation8 + $0x310] sm:$0xff]
        %v543 = vld [vmem:[#allocation8 + $0x318] sm:$0xff]
        %v544 = vld [vmem:[#allocation8 + $0x320] sm:$0xff]
        %v545 = vld [vmem:[#allocation8 + $0x328] sm:$0xff]
        %v546 = vld [vmem:[#allocation8 + $0x330] sm:$0xff]
        %v547 = vld [vmem:[#allocation8 + $0x338] sm:$0xff]
        %v548 = vld [vmem:[#allocation8 + $0x340] sm:$0xff]
        %v549 = vld [vmem:[#allocation8 + $0x348] sm:$0xff]
        %v550 = vld [vmem:[#allocation8 + $0x350] sm:$0xff]
        %v551 = vld [vmem:[#allocation8 + $0x358] sm:$0xff]
        %v552 = vld [vmem:[#allocation8 + $0x360] sm:$0xff]
        %v553 = vld [vmem:[#allocation8 + $0x368] sm:$0xff]
        %v554 = vld [vmem:[#allocation8 + $0x370] sm:$0xff]
        %v555 = vld [vmem:[#allocation8 + $0x378] sm:$0xff]
        %v556 = vld [vmem:[#allocation8 + $0x380] sm:$0xff]
        %v557 = vld [vmem:[#allocation8 + $0x388] sm:$0xff]
        %v558 = vld [vmem:[#allocation8 + $0x390] sm:$0xff]
        %v559 = vld [vmem:[#allocation8 + $0x398] sm:$0xff]
        %v560 = vld [vmem:[#allocation8 + $0x3a0] sm:$0xff]
        %v561 = vld [vmem:[#allocation8 + $0x3a8] sm:$0xff]
        %v562 = vld [vmem:[#allocation8 + $0x3b0] sm:$0xff]
        %v563 = vld [vmem:[#allocation8 + $0x3b8] sm:$0xff]
        %v564 = vld [vmem:[#allocation8 + $0x3c0] sm:$0xff]
        %v565 = vld [vmem:[#allocation8 + $0x3c8] sm:$0xff]
        %v566 = vld [vmem:[#allocation8 + $0x3d0] sm:$0xff]
        %v567 = vld [vmem:[#allocation8 + $0x3d8] sm:$0xff]
        %v568 = vld [vmem:[#allocation8 + $0x3e0] sm:$0xff]
        %v569 = vld [vmem:[#allocation8 + $0x3e8] sm:$0xff]
        %v570 = vld [vmem:[#allocation8 + $0x3f0] sm:$0xff]
        %v571 = vld [vmem:[#allocation8 + $0x3f8] sm:$0xff]
        %v572 = vld [vmem:[#allocation8 + $0x400] sm:$0xff]
        %v573 = vld [vmem:[#allocation8 + $0x408] sm:$0xff]
        %v574 = vld [vmem:[#allocation8 + $0x410] sm:$0xff]
        %v575 = vld [vmem:[#allocation8 + $0x418] sm:$0xff]
        %v576 = vld [vmem:[#allocation8 + $0x420] sm:$0xff]
        %v577 = vld [vmem:[#allocation8 + $0x428] sm:$0xff]
        %v578 = vld [vmem:[#allocation8 + $0x430] sm:$0xff]
        %v579 = vld [vmem:[#allocation8 + $0x438] sm:$0xff]
        %v580 = vld [vmem:[#allocation8 + $0x440] sm:$0xff]
        %v581 = vld [vmem:[#allocation8 + $0x448] sm:$0xff]
        %v582 = vld [vmem:[#allocation8 + $0x450] sm:$0xff]
        %v583 = vld [vmem:[#allocation8 + $0x458] sm:$0xff]
        %v584 = vld [vmem:[#allocation8 + $0x460] sm:$0xff]
        %v585 = vld [vmem:[#allocation8 + $0x468] sm:$0xff]
        %v586 = vld [vmem:[#allocation8 + $0x470] sm:$0xff]
        %v587 = vld [vmem:[#allocation8 + $0x478] sm:$0xff]
        %v588 = vld [vmem:[#allocation8 + $0x480] sm:$0xff]
        %v589 = vld [vmem:[#allocation8 + $0x488] sm:$0xff]
        %v590 = vld [vmem:[#allocation8 + $0x490] sm:$0xff]
        %v591 = vld [vmem:[#allocation8 + $0x498] sm:$0xff]
        %v592 = vld [vmem:[#allocation8 + $0x4a0] sm:$0xff]
        %v593 = vld [vmem:[#allocation8 + $0x4a8] sm:$0xff]
        %v594 = vld [vmem:[#allocation8 + $0x4b0] sm:$0xff]
        %v595 = vld [vmem:[#allocation8 + $0x4b8] sm:$0xff]
        %v596 = vld [vmem:[#allocation8 + $0x4c0] sm:$0xff]
        %v597 = vld [vmem:[#allocation8 + $0x4c8] sm:$0xff]
        %v598 = vld [vmem:[#allocation8 + $0x4d0] sm:$0xff]
        %v599 = vld [vmem:[#allocation8 + $0x4d8] sm:$0xff]
        %v600 = vld [vmem:[#allocation8 + $0x4e0] sm:$0xff]
        %v601 = vld [vmem:[#allocation8 + $0x4e8] sm:$0xff]
        %v602 = vld [vmem:[#allocation8 + $0x4f0] sm:$0xff]
        %v603 = vld [vmem:[#allocation8 + $0x4f8] sm:$0xff]
        %v604 = vld [vmem:[#allocation8 + $0x500] sm:$0xff]
        %v605 = vld [vmem:[#allocation8 + $0x508] sm:$0xff]
        %v606 = vld [vmem:[#allocation8 + $0x510] sm:$0xff]
        %v607 = vld [vmem:[#allocation8 + $0x518] sm:$0xff]
        %v608 = vld [vmem:[#allocation8 + $0x520] sm:$0xff]
        %v609 = vld [vmem:[#allocation8 + $0x528] sm:$0xff]
        %v610 = vld [vmem:[#allocation8 + $0x530] sm:$0xff]
        %v611 = vld [vmem:[#allocation8 + $0x538] sm:$0xff]
        %v612 = vld [vmem:[#allocation8 + $0x540] sm:$0xff]
        %v613 = vld [vmem:[#allocation8 + $0x548] sm:$0xff]
        %v614 = vld [vmem:[#allocation8 + $0x550] sm:$0xff]
        %v615 = vld [vmem:[#allocation8 + $0x558] sm:$0xff]
        %v616 = vld [vmem:[#allocation8 + $0x560] sm:$0xff]
        %v617 = vld [vmem:[#allocation8 + $0x568] sm:$0xff]
        %v618 = vld [vmem:[#allocation8 + $0x570] sm:$0xff]
        %v619 = vld [vmem:[#allocation8 + $0x578] sm:$0xff]
        %v620 = vld [vmem:[#allocation8 + $0x580] sm:$0xff]
        %v621 = vld [vmem:[#allocation8 + $0x588] sm:$0xff]
        %v622 = vld [vmem:[#allocation8 + $0x590] sm:$0xff]
        %v623 = vld [vmem:[#allocation8 + $0x598] sm:$0xff]
        %v624 = vld [vmem:[#allocation8 + $0x5a0] sm:$0xff]
        %v625 = vld [vmem:[#allocation8 + $0x5a8] sm:$0xff]
        %v626 = vld [vmem:[#allocation8 + $0x5b0] sm:$0xff]
        %v627 = vld [vmem:[#allocation8 + $0x5b8] sm:$0xff]
        %v628 = vld [vmem:[#allocation8 + $0x5c0] sm:$0xff]
        %v629 = vld [vmem:[#allocation8 + $0x5c8] sm:$0xff]
        %v630 = vld [vmem:[#allocation8 + $0x5d0] sm:$0xff]
        %v631 = vld [vmem:[#allocation8 + $0x5d8] sm:$0xff]
        %v632 = vld [vmem:[#allocation8 + $0x5e0] sm:$0xff]
        %v633 = vld [vmem:[#allocation8 + $0x5e8] sm:$0xff]
        %v634 = vld [vmem:[#allocation8 + $0x5f0] sm:$0xff]
        %v635 = vld [vmem:[#allocation8 + $0x5f8] sm:$0xff]
        %v636 = vld [vmem:[#allocation8 + $0x600] sm:$0xff]
        %v637 = vld [vmem:[#allocation8 + $0x608] sm:$0xff]
        %v638 = vld [vmem:[#allocation8 + $0x610] sm:$0xff]
        %v639 = vld [vmem:[#allocation8 + $0x618] sm:$0xff]
        %v640 = vld [vmem:[#allocation8 + $0x620] sm:$0xff]
        %v641 = vld [vmem:[#allocation8 + $0x628] sm:$0xff]
        %v642 = vld [vmem:[#allocation8 + $0x630] sm:$0xff]
        %v643 = vld [vmem:[#allocation8 + $0x638] sm:$0xff]
        %v644 = vld [vmem:[#allocation8 + $0x640] sm:$0xff]
        %v645 = vld [vmem:[#allocation8 + $0x648] sm:$0xff]
        %v646 = vld [vmem:[#allocation8 + $0x650] sm:$0xff]
        %v647 = vld [vmem:[#allocation8 + $0x658] sm:$0xff]
        %v648 = vld [vmem:[#allocation8 + $0x660] sm:$0xff]
        %v649 = vld [vmem:[#allocation8 + $0x668] sm:$0xff]
        %v650 = vld [vmem:[#allocation8 + $0x670] sm:$0xff]
        %v651 = vld [vmem:[#allocation8 + $0x678] sm:$0xff]
        %v652 = vld [vmem:[#allocation8 + $0x680] sm:$0xff]
        %v653 = vld [vmem:[#allocation8 + $0x688] sm:$0xff]
        %v654 = vld [vmem:[#allocation8 + $0x690] sm:$0xff]
        %v655 = vld [vmem:[#allocation8 + $0x698] sm:$0xff]
        %v656 = vld [vmem:[#allocation8 + $0x6a0] sm:$0xff]
        %v657 = vld [vmem:[#allocation8 + $0x6a8] sm:$0xff]
        %v658 = vld [vmem:[#allocation8 + $0x6b0] sm:$0xff]
        %v659 = vld [vmem:[#allocation8 + $0x6b8] sm:$0xff]
        %v660 = vld [vmem:[#allocation8 + $0x6c0] sm:$0xff]
        %v661 = vld [vmem:[#allocation8 + $0x6c8] sm:$0xff]
        %v662 = vld [vmem:[#allocation8 + $0x6d0] sm:$0xff]
        %v663 = vld [vmem:[#allocation8 + $0x6d8] sm:$0xff]
        %v664 = vld [vmem:[#allocation8 + $0x6e0] sm:$0xff]
        %v665 = vld [vmem:[#allocation8 + $0x6e8] sm:$0xff]
        %v666 = vld [vmem:[#allocation8 + $0x6f0] sm:$0xff]
        %v667 = vld [vmem:[#allocation8 + $0x6f8] sm:$0xff]
        %v668 = vld [vmem:[#allocation8 + $0x700] sm:$0xff]
        %v669 = vld [vmem:[#allocation8 + $0x708] sm:$0xff]
        %v670 = vld [vmem:[#allocation8 + $0x710] sm:$0xff]
        %v671 = vld [vmem:[#allocation8 + $0x718] sm:$0xff]
        %v672 = vld [vmem:[#allocation8 + $0x720] sm:$0xff]
        %v673 = vld [vmem:[#allocation8 + $0x728] sm:$0xff]
        %v674 = vld [vmem:[#allocation8 + $0x730] sm:$0xff]
        %v675 = vld [vmem:[#allocation8 + $0x738] sm:$0xff]
        %v676 = vld [vmem:[#allocation8 + $0x740] sm:$0xff]
        %v677 = vld [vmem:[#allocation8 + $0x748] sm:$0xff]
        %v678 = vld [vmem:[#allocation8 + $0x750] sm:$0xff]
        %v679 = vld [vmem:[#allocation8 + $0x758] sm:$0xff]
        %v680 = vld [vmem:[#allocation8 + $0x760] sm:$0xff]
        %v681 = vld [vmem:[#allocation8 + $0x768] sm:$0xff]
        %v682 = vld [vmem:[#allocation8 + $0x770] sm:$0xff]
        %v683 = vld [vmem:[#allocation8 + $0x778] sm:$0xff]
        %v684 = vld [vmem:[#allocation8 + $0x780] sm:$0xff]
        %v685 = vld [vmem:[#allocation8 + $0x788] sm:$0xff]
        %v686 = vld [vmem:[#allocation8 + $0x790] sm:$0xff]
        %v687 = vld [vmem:[#allocation8 + $0x798] sm:$0xff]
        %v688 = vld [vmem:[#allocation8 + $0x7a0] sm:$0xff]
        %v689 = vld [vmem:[#allocation8 + $0x7a8] sm:$0xff]
        %v690 = vld [vmem:[#allocation8 + $0x7b0] sm:$0xff]
        %v691 = vld [vmem:[#allocation8 + $0x7b8] sm:$0xff]
        %v692 = vld [vmem:[#allocation8 + $0x7c0] sm:$0xff]
        %v693 = vld [vmem:[#allocation8 + $0x7c8] sm:$0xff]
        %v694 = vld [vmem:[#allocation8 + $0x7d0] sm:$0xff]
        %v695 = vld [vmem:[#allocation8 + $0x7d8] sm:$0xff]
        %v696 = vld [vmem:[#allocation8 + $0x7e0] sm:$0xff]
        %v697 = vld [vmem:[#allocation8 + $0x7e8] sm:$0xff]
        %v698 = vld [vmem:[#allocation8 + $0x7f0] sm:$0xff]
        %v699 = vld [vmem:[#allocation8 + $0x7f8] sm:$0xff]
        %v700 = vld [vmem:[%s359] sm:$0xff]
        %v701 = vld [vmem:[%s359 + $0x8] sm:$0xff]
        %703 = vset.pattern.permute.xlu0 0
        %704 = vperm.xlu0 %703, %v426
        %v705 = vpop.permute.xlu0 %704
        %vm707 = vcmask 64512
        %v709 = vsel %vm707, %v443, 0
        %711 = vmatprep.subr.mxu0 0.0
        %712 = vmatpush1.msra.mxu0 0.0
        %713 = vmatprep.subr.mxu0 0.0
        %714 = vmatpush1.msra.mxu0 0.0
        %715 = vmatprep.subr.mxu0 0.0
        %716 = vmatpush1.msra.mxu0 0.0
        %717 = vmatprep.subr.mxu0 0.0
        %718 = vmatpush1.msra.mxu0 0.0
        %719 = vmatprep.subr.mxu0 0.0
        %720 = vmatpush1.msra.mxu0 0.0
        %721 = vmatprep.subr.mxu0 0.0
        %722 = vmatpush1.msra.mxu0 0.0
        %723 = vmatprep.subr.mxu0 0.0
        %724 = vmatpush1.msra.mxu0 0.0
        %725 = vmatprep.subr.mxu0 0.0
        %726 = vmatpush1.msra.mxu0 0.0
        %727 = vmatprep.subr.mxu0 0.0
        %728 = vmatpush1.msra.mxu0 0.0
        %729 = vmatprep.subr.mxu0 0.0
        %730 = vmatpush1.msra.mxu0 0.0
        %731 = vmatprep.subr.mxu0 0.0
        %732 = vmatpush1.msra.mxu0 0.0
        %733 = vmatprep.subr.mxu0 0.0
        %734 = vmatpush1.msra.mxu0 0.0
        %735 = vmatprep.subr.mxu0 0.0
        %736 = vmatpush1.msra.mxu0 0.0
        %737 = vmatprep.subr.mxu0 0.0
        %738 = vmatpush1.msra.mxu0 0.0
        %739 = vmatprep.subr.mxu0 0.0
        %740 = vmatpush1.msra.mxu0 0.0
        %741 = vmatprep.subr.mxu0 %v701
        %742 = vmatpush1.msra.mxu0 %v700
        %743 = vmatprep.subr.mxu0 0.0
        %744 = vmatpush2.msra.mxu0 0.0
        %745 = vmatprep.subr.mxu0 0.0
        %746 = vmatpush2.msra.mxu0 0.0
        %747 = vmatprep.subr.mxu0 0.0
        %748 = vmatpush2.msra.mxu0 0.0
        %749 = vmatprep.subr.mxu0 0.0
        %750 = vmatpush2.msra.mxu0 0.0
        %751 = vmatprep.subr.mxu0 0.0
        %752 = vmatpush2.msra.mxu0 0.0
        %753 = vmatprep.subr.mxu0 0.0
        %754 = vmatpush2.msra.mxu0 0.0
        %755 = vmatprep.subr.mxu0 0.0
        %756 = vmatpush2.msra.mxu0 0.0
        %757 = vmatprep.subr.mxu0 0.0
        %758 = vmatpush2.msra.mxu0 0.0
        %759 = vmatprep.subr.mxu0 0.0
        %760 = vmatpush2.msra.mxu0 0.0
        %761 = vmatprep.subr.mxu0 0.0
        %762 = vmatpush2.msra.mxu0 0.0
        %763 = vmatprep.subr.mxu0 0.0
        %764 = vmatpush2.msra.mxu0 0.0
        %765 = vmatprep.subr.mxu0 0.0
        %766 = vmatpush2.msra.mxu0 0.0
        %767 = vmatprep.subr.mxu0 0.0
        %768 = vmatpush2.msra.mxu0 0.0
        %769 = vmatprep.subr.mxu0 0.0
        %770 = vmatpush2.msra.mxu0 0.0
        %771 = vmatprep.subr.mxu0 0.0
        %772 = vmatpush2.msra.mxu0 0.0
        %773 = vmatprep.subr.mxu0 0.0
        %774 = vmatpush2.msra.mxu0 0.0
        %775 = vmatprep.mubr.f32.mxu0 0.0
        %776 = vmatmul.mubr.f32.gmra.mxu0 %v709
        %v777 = vpop.f32.mrf.mxu0
        %v778 = vadd.f32 %v705, %v777
        %v779 = vpop.f32.mrf.mxu0
        %v780 = vadd.f32 %v705, %v779
        %781 = vdwg.mxu0
        %782 = vmatprep.subr.mxu0 %v565
        %783 = vmatpush1.msra.mxu0 %v564
        %784 = vmatprep.subr.mxu0 %v557
        %785 = vmatpush1.msra.mxu0 %v556
        %786 = vmatprep.subr.mxu0 %v549
        %787 = vmatpush1.msra.mxu0 %v548
        %788 = vmatprep.subr.mxu0 %v541
        %789 = vmatpush1.msra.mxu0 %v540
        %790 = vmatprep.subr.mxu0 %v533
        %791 = vmatpush1.msra.mxu0 %v532
        %792 = vmatprep.subr.mxu0 %v525
        %793 = vmatpush1.msra.mxu0 %v524
        %794 = vmatprep.subr.mxu0 %v517
        %795 = vmatpush1.msra.mxu0 %v516
        %796 = vmatprep.subr.mxu0 %v509
        %797 = vmatpush1.msra.mxu0 %v508
        %798 = vmatprep.subr.mxu0 %v501
        %799 = vmatpush1.msra.mxu0 %v500
        %800 = vmatprep.subr.mxu0 %v493
        %801 = vmatpush1.msra.mxu0 %v492
        %802 = vmatprep.subr.mxu0 %v485
        %803 = vmatpush1.msra.mxu0 %v484
        %804 = vmatprep.subr.mxu0 %v477
        %805 = vmatpush1.msra.mxu0 %v476
        %806 = vmatprep.subr.mxu0 %v469
        %807 = vmatpush1.msra.mxu0 %v468
        %808 = vmatprep.subr.mxu0 %v461
        %809 = vmatpush1.msra.mxu0 %v460
        %810 = vmatprep.subr.mxu0 %v453
        %811 = vmatpush1.msra.mxu0 %v452
        %812 = vmatprep.subr.mxu0 %v445
        %813 = vmatpush1.msra.mxu0 %v444
        %814 = vmatprep.subr.mxu0 %v693
        %815 = vmatpush2.msra.mxu0 %v692
        %816 = vmatprep.subr.mxu0 %v685
        %817 = vmatpush2.msra.mxu0 %v684
        %818 = vmatprep.subr.mxu0 %v677
        %819 = vmatpush2.msra.mxu0 %v676
        %820 = vmatprep.subr.mxu0 %v669
        %821 = vmatpush2.msra.mxu0 %v668
        %822 = vmatprep.subr.mxu0 %v661
        %823 = vmatpush2.msra.mxu0 %v660
        %824 = vmatprep.subr.mxu0 %v653
        %825 = vmatpush2.msra.mxu0 %v652
        %826 = vmatprep.subr.mxu0 %v645
        %827 = vmatpush2.msra.mxu0 %v644
        %828 = vmatprep.subr.mxu0 %v637
        %829 = vmatpush2.msra.mxu0 %v636
        %830 = vmatprep.subr.mxu0 %v629
        %831 = vmatpush2.msra.mxu0 %v628
        %832 = vmatprep.subr.mxu0 %v621
        %833 = vmatpush2.msra.mxu0 %v620
        %834 = vmatprep.subr.mxu0 %v613
        %835 = vmatpush2.msra.mxu0 %v612
        %836 = vmatprep.subr.mxu0 %v605
        %837 = vmatpush2.msra.mxu0 %v604
        %838 = vmatprep.subr.mxu0 %v597
        %839 = vmatpush2.msra.mxu0 %v596
        %840 = vmatprep.subr.mxu0 %v589
        %841 = vmatpush2.msra.mxu0 %v588
        %842 = vmatprep.subr.mxu0 %v581
        %843 = vmatpush2.msra.mxu0 %v580
        %844 = vmatprep.subr.mxu0 %v573
        %845 = vmatpush2.msra.mxu0 %v572
        %846 = vmatprep.mubr.f32.mxu0 %v780
        %847 = vmatmul.mubr.f32.gmra.mxu0 %v778
        %v848 = vpop.f32.mrf.mxu0
        %v849 = vadd.f32 0.0, %v848
        %v850 = vpop.f32.mrf.mxu0
        %v851 = vadd.f32 0.0, %v850
        %852 = vdwg.mxu0
        %853 = vmatprep.subr.mxu0 %v567
        %854 = vmatpush1.msra.mxu0 %v566
        %855 = vmatprep.subr.mxu0 %v559
        %856 = vmatpush1.msra.mxu0 %v558
        %857 = vmatprep.subr.mxu0 %v551
        %858 = vmatpush1.msra.mxu0 %v550
        %859 = vmatprep.subr.mxu0 %v543
        %860 = vmatpush1.msra.mxu0 %v542
        %861 = vmatprep.subr.mxu0 %v535
        %862 = vmatpush1.msra.mxu0 %v534
        %863 = vmatprep.subr.mxu0 %v527
        %864 = vmatpush1.msra.mxu0 %v526
        %865 = vmatprep.subr.mxu0 %v519
        %866 = vmatpush1.msra.mxu0 %v518
        %867 = vmatprep.subr.mxu0 %v511
        %868 = vmatpush1.msra.mxu0 %v510
        %869 = vmatprep.subr.mxu0 %v503
        %870 = vmatpush1.msra.mxu0 %v502
        %871 = vmatprep.subr.mxu0 %v495
        %872 = vmatpush1.msra.mxu0 %v494
        %873 = vmatprep.subr.mxu0 %v487
        %874 = vmatpush1.msra.mxu0 %v486
        %875 = vmatprep.subr.mxu0 %v479
        %876 = vmatpush1.msra.mxu0 %v478
        %877 = vmatprep.subr.mxu0 %v471
        %878 = vmatpush1.msra.mxu0 %v470
        %879 = vmatprep.subr.mxu0 %v463
        %880 = vmatpush1.msra.mxu0 %v462
        %881 = vmatprep.subr.mxu0 %v455
        %882 = vmatpush1.msra.mxu0 %v454
        %883 = vmatprep.subr.mxu0 %v447
        %884 = vmatpush1.msra.mxu0 %v446
        %885 = vmatprep.subr.mxu0 %v695
        %886 = vmatpush2.msra.mxu0 %v694
        %887 = vmatprep.subr.mxu0 %v687
        %888 = vmatpush2.msra.mxu0 %v686
        %889 = vmatprep.subr.mxu0 %v679
        %890 = vmatpush2.msra.mxu0 %v678
        %891 = vmatprep.subr.mxu0 %v671
        %892 = vmatpush2.msra.mxu0 %v670
        %893 = vmatprep.subr.mxu0 %v663
        %894 = vmatpush2.msra.mxu0 %v662
        %895 = vmatprep.subr.mxu0 %v655
        %896 = vmatpush2.msra.mxu0 %v654
        %897 = vmatprep.subr.mxu0 %v647
        %898 = vmatpush2.msra.mxu0 %v646
        %899 = vmatprep.subr.mxu0 %v639
        %900 = vmatpush2.msra.mxu0 %v638
        %901 = vmatprep.subr.mxu0 %v631
        %902 = vmatpush2.msra.mxu0 %v630
        %903 = vmatprep.subr.mxu0 %v623
        %904 = vmatpush2.msra.mxu0 %v622
        %905 = vmatprep.subr.mxu0 %v615
        %906 = vmatpush2.msra.mxu0 %v614
        %907 = vmatprep.subr.mxu0 %v607
        %908 = vmatpush2.msra.mxu0 %v606
        %909 = vmatprep.subr.mxu0 %v599
        %910 = vmatpush2.msra.mxu0 %v598
        %911 = vmatprep.subr.mxu0 %v591
        %912 = vmatpush2.msra.mxu0 %v590
        %913 = vmatprep.subr.mxu0 %v583
        %914 = vmatpush2.msra.mxu0 %v582
        %915 = vmatprep.subr.mxu0 %v575
        %916 = vmatpush2.msra.mxu0 %v574
        %917 = vmatprep.mubr.f32.mxu0 %v780
        %918 = vmatmul.mubr.f32.gmra.mxu0 %v778
        %v919 = vpop.f32.mrf.mxu0
        %v920 = vadd.f32 0.0, %v919
        %v921 = vpop.f32.mrf.mxu0
        %v922 = vadd.f32 0.0, %v921
        %923 = vdwg.mxu0
        %924 = vmatprep.subr.mxu0 %v569
        %925 = vmatpush1.msra.mxu0 %v568
        %926 = vmatprep.subr.mxu0 %v561
        %927 = vmatpush1.msra.mxu0 %v560
        %928 = vmatprep.subr.mxu0 %v553
        %929 = vmatpush1.msra.mxu0 %v552
        %930 = vmatprep.subr.mxu0 %v545
        %931 = vmatpush1.msra.mxu0 %v544
        %932 = vmatprep.subr.mxu0 %v537
        %933 = vmatpush1.msra.mxu0 %v536
        %934 = vmatprep.subr.mxu0 %v529
        %935 = vmatpush1.msra.mxu0 %v528
        %936 = vmatprep.subr.mxu0 %v521
        %937 = vmatpush1.msra.mxu0 %v520
        %938 = vmatprep.subr.mxu0 %v513
        %939 = vmatpush1.msra.mxu0 %v512
        %940 = vmatprep.subr.mxu0 %v505
        %941 = vmatpush1.msra.mxu0 %v504
        %942 = vmatprep.subr.mxu0 %v497
        %943 = vmatpush1.msra.mxu0 %v496
        %944 = vmatprep.subr.mxu0 %v489
        %945 = vmatpush1.msra.mxu0 %v488
        %946 = vmatprep.subr.mxu0 %v481
        %947 = vmatpush1.msra.mxu0 %v480
        %948 = vmatprep.subr.mxu0 %v473
        %949 = vmatpush1.msra.mxu0 %v472
        %950 = vmatprep.subr.mxu0 %v465
        %951 = vmatpush1.msra.mxu0 %v464
        %952 = vmatprep.subr.mxu0 %v457
        %953 = vmatpush1.msra.mxu0 %v456
        %954 = vmatprep.subr.mxu0 %v449
        %955 = vmatpush1.msra.mxu0 %v448
        %956 = vmatprep.subr.mxu0 %v697
        %957 = vmatpush2.msra.mxu0 %v696
        %958 = vmatprep.subr.mxu0 %v689
        %959 = vmatpush2.msra.mxu0 %v688
        %960 = vmatprep.subr.mxu0 %v681
        %961 = vmatpush2.msra.mxu0 %v680
        %962 = vmatprep.subr.mxu0 %v673
        %963 = vmatpush2.msra.mxu0 %v672
        %964 = vmatprep.subr.mxu0 %v665
        %965 = vmatpush2.msra.mxu0 %v664
        %966 = vmatprep.subr.mxu0 %v657
        %967 = vmatpush2.msra.mxu0 %v656
        %968 = vmatprep.subr.mxu0 %v649
        %969 = vmatpush2.msra.mxu0 %v648
        %970 = vmatprep.subr.mxu0 %v641
        %971 = vmatpush2.msra.mxu0 %v640
        %972 = vmatprep.subr.mxu0 %v633
        %973 = vmatpush2.msra.mxu0 %v632
        %974 = vmatprep.subr.mxu0 %v625
        %975 = vmatpush2.msra.mxu0 %v624
        %976 = vmatprep.subr.mxu0 %v617
        %977 = vmatpush2.msra.mxu0 %v616
        %978 = vmatprep.subr.mxu0 %v609
        %979 = vmatpush2.msra.mxu0 %v608
        %980 = vmatprep.subr.mxu0 %v601
        %981 = vmatpush2.msra.mxu0 %v600
        %982 = vmatprep.subr.mxu0 %v593
        %983 = vmatpush2.msra.mxu0 %v592
        %984 = vmatprep.subr.mxu0 %v585
        %985 = vmatpush2.msra.mxu0 %v584
        %986 = vmatprep.subr.mxu0 %v577
        %987 = vmatpush2.msra.mxu0 %v576
        %988 = vmatprep.mubr.f32.mxu0 %v780
        %989 = vmatmul.mubr.f32.gmra.mxu0 %v778
        %v990 = vpop.f32.mrf.mxu0
        %v991 = vadd.f32 0.0, %v990
        %v992 = vpop.f32.mrf.mxu0
        %v993 = vadd.f32 0.0, %v992
        %994 = vdwg.mxu0
        %995 = vmatprep.subr.mxu0 %v571
        %996 = vmatpush1.msra.mxu0 %v570
        %997 = vmatprep.subr.mxu0 %v563
        %998 = vmatpush1.msra.mxu0 %v562
        %999 = vmatprep.subr.mxu0 %v555
        %1000 = vmatpush1.msra.mxu0 %v554
        %1001 = vmatprep.subr.mxu0 %v547
        %1002 = vmatpush1.msra.mxu0 %v546
        %1003 = vmatprep.subr.mxu0 %v539
        %1004 = vmatpush1.msra.mxu0 %v538
        %1005 = vmatprep.subr.mxu0 %v531
        %1006 = vmatpush1.msra.mxu0 %v530
        %1007 = vmatprep.subr.mxu0 %v523
        %1008 = vmatpush1.msra.mxu0 %v522
        %1009 = vmatprep.subr.mxu0 %v515
        %1010 = vmatpush1.msra.mxu0 %v514
        %1011 = vmatprep.subr.mxu0 %v507
        %1012 = vmatpush1.msra.mxu0 %v506
        %1013 = vmatprep.subr.mxu0 %v499
        %1014 = vmatpush1.msra.mxu0 %v498
        %1015 = vmatprep.subr.mxu0 %v491
        %1016 = vmatpush1.msra.mxu0 %v490
        %1017 = vmatprep.subr.mxu0 %v483
        %1018 = vmatpush1.msra.mxu0 %v482
        %1019 = vmatprep.subr.mxu0 %v475
        %1020 = vmatpush1.msra.mxu0 %v474
        %1021 = vmatprep.subr.mxu0 %v467
        %1022 = vmatpush1.msra.mxu0 %v466
        %1023 = vmatprep.subr.mxu0 %v459
        %1024 = vmatpush1.msra.mxu0 %v458
        %1025 = vmatprep.subr.mxu0 %v451
        %1026 = vmatpush1.msra.mxu0 %v450
        %1027 = vmatprep.subr.mxu0 %v699
        %1028 = vmatpush2.msra.mxu0 %v698
        %1029 = vmatprep.subr.mxu0 %v691
        %1030 = vmatpush2.msra.mxu0 %v690
        %1031 = vmatprep.subr.mxu0 %v683
        %1032 = vmatpush2.msra.mxu0 %v682
        %1033 = vmatprep.subr.mxu0 %v675
        %1034 = vmatpush2.msra.mxu0 %v674
        %1035 = vmatprep.subr.mxu0 %v667
        %1036 = vmatpush2.msra.mxu0 %v666
        %1037 = vmatprep.subr.mxu0 %v659
        %1038 = vmatpush2.msra.mxu0 %v658
        %1039 = vmatprep.subr.mxu0 %v651
        %1040 = vmatpush2.msra.mxu0 %v650
        %1041 = vmatprep.subr.mxu0 %v643
        %1042 = vmatpush2.msra.mxu0 %v642
        %1043 = vmatprep.subr.mxu0 %v635
        %1044 = vmatpush2.msra.mxu0 %v634
        %1045 = vmatprep.subr.mxu0 %v627
        %1046 = vmatpush2.msra.mxu0 %v626
        %1047 = vmatprep.subr.mxu0 %v619
        %1048 = vmatpush2.msra.mxu0 %v618
        %1049 = vmatprep.subr.mxu0 %v611
        %1050 = vmatpush2.msra.mxu0 %v610
        %1051 = vmatprep.subr.mxu0 %v603
        %1052 = vmatpush2.msra.mxu0 %v602
        %1053 = vmatprep.subr.mxu0 %v595
        %1054 = vmatpush2.msra.mxu0 %v594
        %1055 = vmatprep.subr.mxu0 %v587
        %1056 = vmatpush2.msra.mxu0 %v586
        %1057 = vmatprep.subr.mxu0 %v579
        %1058 = vmatpush2.msra.mxu0 %v578
        %1059 = vmatprep.mubr.f32.mxu0 %v780
        %1060 = vmatmul.mubr.f32.gmra.mxu0 %v778
        %v1061 = vpop.f32.mrf.mxu0
        %v1062 = vadd.f32 0.0, %v1061
        %v1063 = vpop.f32.mrf.mxu0
        %v1064 = vadd.f32 0.0, %v1063
        %1065 = vdwg.mxu0
        %v1066 = vld [vmem:[%s368] sm:$0xff]
        %v1067 = vld [vmem:[%s368 + $0x8] sm:$0xff]
        %v1068 = vld [vmem:[%s368 + $0x10] sm:$0xff]
        %v1069 = vld [vmem:[%s368 + $0x18] sm:$0xff]
        %v1074 = vcombine.high %v1066, %v1066
        %v1075 = vcombine.high %v1067, %v1067
        %v1076 = vcombine.high %v1068, %v1068
        %v1077 = vcombine.high %v1069, %v1069
        %v1090 = vrot.slane %v849, 4
        %v1091 = vrot.slane %v851, 4
        %v1092 = vrot.slane %v920, 4
        %v1093 = vrot.slane %v922, 4
        %v1094 = vrot.slane %v991, 4
        %v1095 = vrot.slane %v993, 4
        %v1096 = vrot.slane %v1062, 4
        %v1097 = vrot.slane %v1064, 4
        %vm1106 = vcmask 1043456
        %v1107 = vsel %vm1106, %v1066, %v1090
        %v1108 = vsel %vm1106, %v1074, %v1091
        %v1109 = vsel %vm1106, %v1067, %v1092
        %v1110 = vsel %vm1106, %v1075, %v1093
        %v1111 = vsel %vm1106, %v1068, %v1094
        %v1112 = vsel %vm1106, %v1076, %v1095
        %v1113 = vsel %vm1106, %v1069, %v1096
        %v1114 = vsel %vm1106, %v1077, %v1097
        %1115 = vrot.lane.b32.xlu0 %v1107, 33
        %v1116 = vpop.permute.xlu0 %1115
        %1117 = vrot.lane.b32.xlu0 %v1108, 33
        %v1118 = vpop.permute.xlu0 %1117
        %1119 = vrot.lane.b32.xlu0 %v1109, 33
        %v1120 = vpop.permute.xlu0 %1119
        %1121 = vrot.lane.b32.xlu0 %v1110, 33
        %v1122 = vpop.permute.xlu0 %1121
        %1123 = vrot.lane.b32.xlu0 %v1111, 33
        %v1124 = vpop.permute.xlu0 %1123
        %1125 = vrot.lane.b32.xlu0 %v1112, 33
        %v1126 = vpop.permute.xlu0 %1125
        %1127 = vrot.lane.b32.xlu0 %v1113, 33
        %v1128 = vpop.permute.xlu0 %1127
        %1129 = vrot.lane.b32.xlu0 %v1114, 33
        %v1130 = vpop.permute.xlu0 %1129
        %v1131 = vlaneseq
        %v1132 = vand.u32 %v1131, 127
        %vm1133 = vcmp.lt.s32.totalorder %v1132, 33
        %v1134 = vsel %vm1133, %v1128, %v1130
        %v1135 = vsel %vm1133, %v1126, %v1128
        %v1136 = vsel %vm1133, %v1124, %v1126
        %v1137 = vsel %vm1133, %v1122, %v1124
        %v1138 = vsel %vm1133, %v1120, %v1122
        %v1139 = vsel %vm1133, %v1118, %v1120
        %v1140 = vsel %vm1133, %v1116, %v1118
        %v1141 = vsel %vm1133, %v1130, %v1116
        %v1142 = vlaneseq
        %v1143 = vshrl.u32 %v1142, 7
        %v1144 = vsub.s32 0, %v1143
        %v1145 = vrot.slane %v427, %v1144
        %v1146 = vlaneseq
        %v1147 = vshrl.u32 %v1146, 7
        %v1148 = vsub.s32 0, %v1147
        %v1149 = vrot.slane %v428, %v1148
        %v1150 = vlaneseq
        %v1151 = vshrl.u32 %v1150, 7
        %v1152 = vsub.s32 0, %v1151
        %v1153 = vrot.slane %v429, %v1152
        %v1154 = vlaneseq
        %v1155 = vshrl.u32 %v1154, 7
        %v1156 = vsub.s32 0, %v1155
        %v1157 = vrot.slane %v430, %v1156
        %v1158 = vlaneseq
        %v1159 = vshrl.u32 %v1158, 7
        %v1160 = vsub.s32 0, %v1159
        %v1161 = vrot.slane %v431, %v1160
        %v1162 = vlaneseq
        %v1163 = vshrl.u32 %v1162, 7
        %v1164 = vsub.s32 0, %v1163
        %v1165 = vrot.slane %v432, %v1164
        %v1166 = vlaneseq
        %v1167 = vshrl.u32 %v1166, 7
        %v1168 = vsub.s32 0, %v1167
        %v1169 = vrot.slane %v433, %v1168
        %v1170 = vlaneseq
        %v1171 = vshrl.u32 %v1170, 7
        %v1172 = vsub.s32 0, %v1171
        %v1173 = vrot.slane %v434, %v1172
        %v1174 = vmul.f32 %v1141, %v1145
        %v1175 = vmul.f32 %v1140, %v1149
        %v1176 = vmul.f32 %v1139, %v1153
        %v1177 = vmul.f32 %v1138, %v1157
        %v1178 = vmul.f32 %v1137, %v1161
        %v1179 = vmul.f32 %v1136, %v1165
        %v1180 = vmul.f32 %v1135, %v1169
        %v1181 = vmul.f32 %v1134, %v1173
        %1182 = vrot.lane.b32.xlu0 %v1107, 32
        %v1183 = vpop.permute.xlu0 %1182
        %1184 = vrot.lane.b32.xlu0 %v1108, 32
        %v1185 = vpop.permute.xlu0 %1184
        %1186 = vrot.lane.b32.xlu0 %v1109, 32
        %v1187 = vpop.permute.xlu0 %1186
        %1188 = vrot.lane.b32.xlu0 %v1110, 32
        %v1189 = vpop.permute.xlu0 %1188
        %1190 = vrot.lane.b32.xlu0 %v1111, 32
        %v1191 = vpop.permute.xlu0 %1190
        %1192 = vrot.lane.b32.xlu0 %v1112, 32
        %v1193 = vpop.permute.xlu0 %1192
        %1194 = vrot.lane.b32.xlu0 %v1113, 32
        %v1195 = vpop.permute.xlu0 %1194
        %1196 = vrot.lane.b32.xlu0 %v1114, 32
        %v1197 = vpop.permute.xlu0 %1196
        %vm1198 = vcmp.lt.s32.totalorder %v1132, 32
        %v1199 = vsel %vm1198, %v1195, %v1197
        %v1200 = vsel %vm1198, %v1193, %v1195
        %v1201 = vsel %vm1198, %v1191, %v1193
        %v1202 = vsel %vm1198, %v1189, %v1191
        %v1203 = vsel %vm1198, %v1187, %v1189
        %v1204 = vsel %vm1198, %v1185, %v1187
        %v1205 = vsel %vm1198, %v1183, %v1185
        %v1206 = vsel %vm1198, %v1197, %v1183
        %v1207 = vlaneseq
        %v1208 = vshrl.u32 %v1207, 7
        %v1209 = vsub.s32 1, %v1208
        %v1210 = vrot.slane %v427, %v1209
        %v1211 = vlaneseq
        %v1212 = vshrl.u32 %v1211, 7
        %v1213 = vsub.s32 1, %v1212
        %v1214 = vrot.slane %v428, %v1213
        %v1215 = vlaneseq
        %v1216 = vshrl.u32 %v1215, 7
        %v1217 = vsub.s32 1, %v1216
        %v1218 = vrot.slane %v429, %v1217
        %v1219 = vlaneseq
        %v1220 = vshrl.u32 %v1219, 7
        %v1221 = vsub.s32 1, %v1220
        %v1222 = vrot.slane %v430, %v1221
        %v1223 = vlaneseq
        %v1224 = vshrl.u32 %v1223, 7
        %v1225 = vsub.s32 1, %v1224
        %v1226 = vrot.slane %v431, %v1225
        %v1227 = vlaneseq
        %v1228 = vshrl.u32 %v1227, 7
        %v1229 = vsub.s32 1, %v1228
        %v1230 = vrot.slane %v432, %v1229
        %v1231 = vlaneseq
        %v1232 = vshrl.u32 %v1231, 7
        %v1233 = vsub.s32 1, %v1232
        %v1234 = vrot.slane %v433, %v1233
        %v1235 = vlaneseq
        %v1236 = vshrl.u32 %v1235, 7
        %v1237 = vsub.s32 1, %v1236
        %v1238 = vrot.slane %v434, %v1237
        %v1239 = vmul.f32 %v1206, %v1210
        %v1240 = vmul.f32 %v1205, %v1214
        %v1241 = vmul.f32 %v1204, %v1218
        %v1242 = vmul.f32 %v1203, %v1222
        %v1243 = vmul.f32 %v1202, %v1226
        %v1244 = vmul.f32 %v1201, %v1230
        %v1245 = vmul.f32 %v1200, %v1234
        %v1246 = vmul.f32 %v1199, %v1238
        %1247 = vrot.lane.b32.xlu0 %v1107, 31
        %v1248 = vpop.permute.xlu0 %1247
        %1249 = vrot.lane.b32.xlu0 %v1108, 31
        %v1250 = vpop.permute.xlu0 %1249
        %1251 = vrot.lane.b32.xlu0 %v1109, 31
        %v1252 = vpop.permute.xlu0 %1251
        %1253 = vrot.lane.b32.xlu0 %v1110, 31
        %v1254 = vpop.permute.xlu0 %1253
        %1255 = vrot.lane.b32.xlu0 %v1111, 31
        %v1256 = vpop.permute.xlu0 %1255
        %1257 = vrot.lane.b32.xlu0 %v1112, 31
        %v1258 = vpop.permute.xlu0 %1257
        %1259 = vrot.lane.b32.xlu0 %v1113, 31
        %v1260 = vpop.permute.xlu0 %1259
        %1261 = vrot.lane.b32.xlu0 %v1114, 31
        %v1262 = vpop.permute.xlu0 %1261
        %vm1263 = vcmp.lt.s32.totalorder %v1132, 31
        %v1264 = vsel %vm1263, %v1260, %v1262
        %v1265 = vsel %vm1263, %v1258, %v1260
        %v1266 = vsel %vm1263, %v1256, %v1258
        %v1267 = vsel %vm1263, %v1254, %v1256
        %v1268 = vsel %vm1263, %v1252, %v1254
        %v1269 = vsel %vm1263, %v1250, %v1252
        %v1270 = vsel %vm1263, %v1248, %v1250
        %v1271 = vsel %vm1263, %v1262, %v1248
        %v1272 = vlaneseq
        %v1273 = vshrl.u32 %v1272, 7
        %v1274 = vsub.s32 2, %v1273
        %v1275 = vrot.slane %v427, %v1274
        %v1276 = vlaneseq
        %v1277 = vshrl.u32 %v1276, 7
        %v1278 = vsub.s32 2, %v1277
        %v1279 = vrot.slane %v428, %v1278
        %v1280 = vlaneseq
        %v1281 = vshrl.u32 %v1280, 7
        %v1282 = vsub.s32 2, %v1281
        %v1283 = vrot.slane %v429, %v1282
        %v1284 = vlaneseq
        %v1285 = vshrl.u32 %v1284, 7
        %v1286 = vsub.s32 2, %v1285
        %v1287 = vrot.slane %v430, %v1286
        %v1288 = vlaneseq
        %v1289 = vshrl.u32 %v1288, 7
        %v1290 = vsub.s32 2, %v1289
        %v1291 = vrot.slane %v431, %v1290
        %v1292 = vlaneseq
        %v1293 = vshrl.u32 %v1292, 7
        %v1294 = vsub.s32 2, %v1293
        %v1295 = vrot.slane %v432, %v1294
        %v1296 = vlaneseq
        %v1297 = vshrl.u32 %v1296, 7
        %v1298 = vsub.s32 2, %v1297
        %v1299 = vrot.slane %v433, %v1298
        %v1300 = vlaneseq
        %v1301 = vshrl.u32 %v1300, 7
        %v1302 = vsub.s32 2, %v1301
        %v1303 = vrot.slane %v434, %v1302
        %v1304 = vmul.f32 %v1271, %v1275
        %v1305 = vmul.f32 %v1270, %v1279
        %v1306 = vmul.f32 %v1269, %v1283
        %v1307 = vmul.f32 %v1268, %v1287
        %v1308 = vmul.f32 %v1267, %v1291
        %v1309 = vmul.f32 %v1266, %v1295
        %v1310 = vmul.f32 %v1265, %v1299
        %v1311 = vmul.f32 %v1264, %v1303
        %1312 = vrot.lane.b32.xlu0 %v1107, 1
        %v1313 = vpop.permute.xlu0 %1312
        %1314 = vrot.lane.b32.xlu0 %v1108, 1
        %v1315 = vpop.permute.xlu0 %1314
        %1316 = vrot.lane.b32.xlu0 %v1109, 1
        %v1317 = vpop.permute.xlu0 %1316
        %1318 = vrot.lane.b32.xlu0 %v1110, 1
        %v1319 = vpop.permute.xlu0 %1318
        %1320 = vrot.lane.b32.xlu0 %v1111, 1
        %v1321 = vpop.permute.xlu0 %1320
        %1322 = vrot.lane.b32.xlu0 %v1112, 1
        %v1323 = vpop.permute.xlu0 %1322
        %1324 = vrot.lane.b32.xlu0 %v1113, 1
        %v1325 = vpop.permute.xlu0 %1324
        %1326 = vrot.lane.b32.xlu0 %v1114, 1
        %v1327 = vpop.permute.xlu0 %1326
        %vm1328 = vcmp.lt.s32.totalorder %v1132, 1
        %v1329 = vsel %vm1328, %v1325, %v1327
        %v1330 = vsel %vm1328, %v1323, %v1325
        %v1331 = vsel %vm1328, %v1321, %v1323
        %v1332 = vsel %vm1328, %v1319, %v1321
        %v1333 = vsel %vm1328, %v1317, %v1319
        %v1334 = vsel %vm1328, %v1315, %v1317
        %v1335 = vsel %vm1328, %v1313, %v1315
        %v1336 = vsel %vm1328, %v1327, %v1313
        %v1337 = vlaneseq
        %v1338 = vshrl.u32 %v1337, 7
        %v1339 = vsub.s32 3, %v1338
        %v1340 = vrot.slane %v427, %v1339
        %v1341 = vlaneseq
        %v1342 = vshrl.u32 %v1341, 7
        %v1343 = vsub.s32 3, %v1342
        %v1344 = vrot.slane %v428, %v1343
        %v1345 = vlaneseq
        %v1346 = vshrl.u32 %v1345, 7
        %v1347 = vsub.s32 3, %v1346
        %v1348 = vrot.slane %v429, %v1347
        %v1349 = vlaneseq
        %v1350 = vshrl.u32 %v1349, 7
        %v1351 = vsub.s32 3, %v1350
        %v1352 = vrot.slane %v430, %v1351
        %v1353 = vlaneseq
        %v1354 = vshrl.u32 %v1353, 7
        %v1355 = vsub.s32 3, %v1354
        %v1356 = vrot.slane %v431, %v1355
        %v1357 = vlaneseq
        %v1358 = vshrl.u32 %v1357, 7
        %v1359 = vsub.s32 3, %v1358
        %v1360 = vrot.slane %v432, %v1359
        %v1361 = vlaneseq
        %v1362 = vshrl.u32 %v1361, 7
        %v1363 = vsub.s32 3, %v1362
        %v1364 = vrot.slane %v433, %v1363
        %v1365 = vlaneseq
        %v1366 = vshrl.u32 %v1365, 7
        %v1367 = vsub.s32 3, %v1366
        %v1368 = vrot.slane %v434, %v1367
        %v1369 = vmul.f32 %v1336, %v1340
        %v1370 = vmul.f32 %v1335, %v1344
        %v1371 = vmul.f32 %v1334, %v1348
        %v1372 = vmul.f32 %v1333, %v1352
        %v1373 = vmul.f32 %v1332, %v1356
        %v1374 = vmul.f32 %v1331, %v1360
        %v1375 = vmul.f32 %v1330, %v1364
        %v1376 = vmul.f32 %v1329, %v1368
        %1377 = vrot.lane.b32.xlu0 %v1107, 127
        %v1378 = vpop.permute.xlu0 %1377
        %1379 = vrot.lane.b32.xlu0 %v1108, 127
        %v1380 = vpop.permute.xlu0 %1379
        %1381 = vrot.lane.b32.xlu0 %v1109, 127
        %v1382 = vpop.permute.xlu0 %1381
        %1383 = vrot.lane.b32.xlu0 %v1110, 127
        %v1384 = vpop.permute.xlu0 %1383
        %1385 = vrot.lane.b32.xlu0 %v1111, 127
        %v1386 = vpop.permute.xlu0 %1385
        %1387 = vrot.lane.b32.xlu0 %v1112, 127
        %v1388 = vpop.permute.xlu0 %1387
        %1389 = vrot.lane.b32.xlu0 %v1113, 127
        %v1390 = vpop.permute.xlu0 %1389
        %1391 = vrot.lane.b32.xlu0 %v1114, 127
        %v1392 = vpop.permute.xlu0 %1391
        %vm1393 = vcmp.lt.s32.totalorder %v1132, 127
        %v1394 = vsel %vm1393, %v1390, %v1392
        %v1395 = vsel %vm1393, %v1388, %v1390
        %v1396 = vsel %vm1393, %v1386, %v1388
        %v1397 = vsel %vm1393, %v1384, %v1386
        %v1398 = vsel %vm1393, %v1382, %v1384
        %v1399 = vsel %vm1393, %v1380, %v1382
        %v1400 = vsel %vm1393, %v1378, %v1380
        %v1401 = vsel %vm1393, %v1392, %v1378
        %v1402 = vlaneseq
        %v1403 = vshrl.u32 %v1402, 7
        %v1404 = vsub.s32 5, %v1403
        %v1405 = vrot.slane %v427, %v1404
        %v1406 = vlaneseq
        %v1407 = vshrl.u32 %v1406, 7
        %v1408 = vsub.s32 5, %v1407
        %v1409 = vrot.slane %v428, %v1408
        %v1410 = vlaneseq
        %v1411 = vshrl.u32 %v1410, 7
        %v1412 = vsub.s32 5, %v1411
        %v1413 = vrot.slane %v429, %v1412
        %v1414 = vlaneseq
        %v1415 = vshrl.u32 %v1414, 7
        %v1416 = vsub.s32 5, %v1415
        %v1417 = vrot.slane %v430, %v1416
        %v1418 = vlaneseq
        %v1419 = vshrl.u32 %v1418, 7
        %v1420 = vsub.s32 5, %v1419
        %v1421 = vrot.slane %v431, %v1420
        %v1422 = vlaneseq
        %v1423 = vshrl.u32 %v1422, 7
        %v1424 = vsub.s32 5, %v1423
        %v1425 = vrot.slane %v432, %v1424
        %v1426 = vlaneseq
        %v1427 = vshrl.u32 %v1426, 7
        %v1428 = vsub.s32 5, %v1427
        %v1429 = vrot.slane %v433, %v1428
        %v1430 = vlaneseq
        %v1431 = vshrl.u32 %v1430, 7
        %v1432 = vsub.s32 5, %v1431
        %v1433 = vrot.slane %v434, %v1432
        %v1434 = vmul.f32 %v1400, %v1405
        %v1435 = vmul.f32 %v1399, %v1409
        %v1436 = vmul.f32 %v1398, %v1413
        %v1437 = vmul.f32 %v1397, %v1417
        %v1438 = vmul.f32 %v1396, %v1421
        %v1439 = vmul.f32 %v1395, %v1425
        %v1440 = vmul.f32 %v1394, %v1429
        %v1441 = vmul.f32 %v1401, %v1433
        %1442 = vrot.lane.b32.xlu0 %v1107, 97
        %v1443 = vpop.permute.xlu0 %1442
        %1444 = vrot.lane.b32.xlu0 %v1108, 97
        %v1445 = vpop.permute.xlu0 %1444
        %1446 = vrot.lane.b32.xlu0 %v1109, 97
        %v1447 = vpop.permute.xlu0 %1446
        %1448 = vrot.lane.b32.xlu0 %v1110, 97
        %v1449 = vpop.permute.xlu0 %1448
        %1450 = vrot.lane.b32.xlu0 %v1111, 97
        %v1451 = vpop.permute.xlu0 %1450
        %1452 = vrot.lane.b32.xlu0 %v1112, 97
        %v1453 = vpop.permute.xlu0 %1452
        %1454 = vrot.lane.b32.xlu0 %v1113, 97
        %v1455 = vpop.permute.xlu0 %1454
        %1456 = vrot.lane.b32.xlu0 %v1114, 97
        %v1457 = vpop.permute.xlu0 %1456
        %vm1458 = vcmp.lt.s32.totalorder %v1132, 97
        %v1459 = vsel %vm1458, %v1455, %v1457
        %v1460 = vsel %vm1458, %v1453, %v1455
        %v1461 = vsel %vm1458, %v1451, %v1453
        %v1462 = vsel %vm1458, %v1449, %v1451
        %v1463 = vsel %vm1458, %v1447, %v1449
        %v1464 = vsel %vm1458, %v1445, %v1447
        %v1465 = vsel %vm1458, %v1443, %v1445
        %v1466 = vsel %vm1458, %v1457, %v1443
        %v1467 = vlaneseq
        %v1468 = vshrl.u32 %v1467, 7
        %v1469 = vsub.s32 6, %v1468
        %v1470 = vrot.slane %v427, %v1469
        %v1471 = vlaneseq
        %v1472 = vshrl.u32 %v1471, 7
        %v1473 = vsub.s32 6, %v1472
        %v1474 = vrot.slane %v428, %v1473
        %v1475 = vlaneseq
        %v1476 = vshrl.u32 %v1475, 7
        %v1477 = vsub.s32 6, %v1476
        %v1478 = vrot.slane %v429, %v1477
        %v1479 = vlaneseq
        %v1480 = vshrl.u32 %v1479, 7
        %v1481 = vsub.s32 6, %v1480
        %v1482 = vrot.slane %v430, %v1481
        %v1483 = vlaneseq
        %v1484 = vshrl.u32 %v1483, 7
        %v1485 = vsub.s32 6, %v1484
        %v1486 = vrot.slane %v431, %v1485
        %v1487 = vlaneseq
        %v1488 = vshrl.u32 %v1487, 7
        %v1489 = vsub.s32 6, %v1488
        %v1490 = vrot.slane %v432, %v1489
        %v1491 = vlaneseq
        %v1492 = vshrl.u32 %v1491, 7
        %v1493 = vsub.s32 6, %v1492
        %v1494 = vrot.slane %v433, %v1493
        %v1495 = vlaneseq
        %v1496 = vshrl.u32 %v1495, 7
        %v1497 = vsub.s32 6, %v1496
        %v1498 = vrot.slane %v434, %v1497
        %v1499 = vmul.f32 %v1465, %v1470
        %v1500 = vmul.f32 %v1464, %v1474
        %v1501 = vmul.f32 %v1463, %v1478
        %v1502 = vmul.f32 %v1462, %v1482
        %v1503 = vmul.f32 %v1461, %v1486
        %v1504 = vmul.f32 %v1460, %v1490
        %v1505 = vmul.f32 %v1459, %v1494
        %v1506 = vmul.f32 %v1466, %v1498
        %1507 = vrot.lane.b32.xlu0 %v1107, 96
        %v1508 = vpop.permute.xlu0 %1507
        %1509 = vrot.lane.b32.xlu0 %v1108, 96
        %v1510 = vpop.permute.xlu0 %1509
        %1511 = vrot.lane.b32.xlu0 %v1109, 96
        %v1512 = vpop.permute.xlu0 %1511
        %1513 = vrot.lane.b32.xlu0 %v1110, 96
        %v1514 = vpop.permute.xlu0 %1513
        %1515 = vrot.lane.b32.xlu0 %v1111, 96
        %v1516 = vpop.permute.xlu0 %1515
        %1517 = vrot.lane.b32.xlu0 %v1112, 96
        %v1518 = vpop.permute.xlu0 %1517
        %1519 = vrot.lane.b32.xlu0 %v1113, 96
        %v1520 = vpop.permute.xlu0 %1519
        %1521 = vrot.lane.b32.xlu0 %v1114, 96
        %v1522 = vpop.permute.xlu0 %1521
        %vm1523 = vcmp.lt.s32.totalorder %v1132, 96
        %v1524 = vsel %vm1523, %v1520, %v1522
        %v1525 = vsel %vm1523, %v1518, %v1520
        %v1526 = vsel %vm1523, %v1516, %v1518
        %v1527 = vsel %vm1523, %v1514, %v1516
        %v1528 = vsel %vm1523, %v1512, %v1514
        %v1529 = vsel %vm1523, %v1510, %v1512
        %v1530 = vsel %vm1523, %v1508, %v1510
        %v1531 = vsel %vm1523, %v1522, %v1508
        %v1532 = vlaneseq
        %v1533 = vshrl.u32 %v1532, 7
        %v1534 = vsub.s32 7, %v1533
        %v1535 = vrot.slane %v427, %v1534
        %v1536 = vlaneseq
        %v1537 = vshrl.u32 %v1536, 7
        %v1538 = vsub.s32 7, %v1537
        %v1539 = vrot.slane %v428, %v1538
        %v1540 = vlaneseq
        %v1541 = vshrl.u32 %v1540, 7
        %v1542 = vsub.s32 7, %v1541
        %v1543 = vrot.slane %v429, %v1542
        %v1544 = vlaneseq
        %v1545 = vshrl.u32 %v1544, 7
        %v1546 = vsub.s32 7, %v1545
        %v1547 = vrot.slane %v430, %v1546
        %v1548 = vlaneseq
        %v1549 = vshrl.u32 %v1548, 7
        %v1550 = vsub.s32 7, %v1549
        %v1551 = vrot.slane %v431, %v1550
        %v1552 = vlaneseq
        %v1553 = vshrl.u32 %v1552, 7
        %v1554 = vsub.s32 7, %v1553
        %v1555 = vrot.slane %v432, %v1554
        %v1556 = vlaneseq
        %v1557 = vshrl.u32 %v1556, 7
        %v1558 = vsub.s32 7, %v1557
        %v1559 = vrot.slane %v433, %v1558
        %v1560 = vlaneseq
        %v1561 = vshrl.u32 %v1560, 7
        %v1562 = vsub.s32 7, %v1561
        %v1563 = vrot.slane %v434, %v1562
        %v1564 = vmul.f32 %v1530, %v1535
        %v1565 = vmul.f32 %v1529, %v1539
        %v1566 = vmul.f32 %v1528, %v1543
        %v1567 = vmul.f32 %v1527, %v1547
        %v1568 = vmul.f32 %v1526, %v1551
        %v1569 = vmul.f32 %v1525, %v1555
        %v1570 = vmul.f32 %v1524, %v1559
        %v1571 = vmul.f32 %v1531, %v1563
        %1572 = vrot.lane.b32.xlu0 %v1107, 95
        %v1573 = vpop.permute.xlu0 %1572
        %1574 = vrot.lane.b32.xlu0 %v1108, 95
        %v1575 = vpop.permute.xlu0 %1574
        %1576 = vrot.lane.b32.xlu0 %v1109, 95
        %v1577 = vpop.permute.xlu0 %1576
        %1578 = vrot.lane.b32.xlu0 %v1110, 95
        %v1579 = vpop.permute.xlu0 %1578
        %1580 = vrot.lane.b32.xlu0 %v1111, 95
        %v1581 = vpop.permute.xlu0 %1580
        %1582 = vrot.lane.b32.xlu0 %v1112, 95
        %v1583 = vpop.permute.xlu0 %1582
        %1584 = vrot.lane.b32.xlu0 %v1113, 95
        %v1585 = vpop.permute.xlu0 %1584
        %1586 = vrot.lane.b32.xlu0 %v1114, 95
        %v1587 = vpop.permute.xlu0 %1586
        %vm1588 = vcmp.lt.s32.totalorder %v1132, 95
        %v1589 = vsel %vm1588, %v1585, %v1587
        %v1590 = vsel %vm1588, %v1583, %v1585
        %v1591 = vsel %vm1588, %v1581, %v1583
        %v1592 = vsel %vm1588, %v1579, %v1581
        %v1593 = vsel %vm1588, %v1577, %v1579
        %v1594 = vsel %vm1588, %v1575, %v1577
        %v1595 = vsel %vm1588, %v1573, %v1575
        %v1596 = vsel %vm1588, %v1587, %v1573
        %v1597 = vlaneseq
        %v1598 = vshrl.u32 %v1597, 7
        %v1599 = vsub.s32 0, %v1598
        %v1600 = vrot.slane %v435, %v1599
        %v1601 = vlaneseq
        %v1602 = vshrl.u32 %v1601, 7
        %v1603 = vsub.s32 0, %v1602
        %v1604 = vrot.slane %v436, %v1603
        %v1605 = vlaneseq
        %v1606 = vshrl.u32 %v1605, 7
        %v1607 = vsub.s32 0, %v1606
        %v1608 = vrot.slane %v437, %v1607
        %v1609 = vlaneseq
        %v1610 = vshrl.u32 %v1609, 7
        %v1611 = vsub.s32 0, %v1610
        %v1612 = vrot.slane %v438, %v1611
        %v1613 = vlaneseq
        %v1614 = vshrl.u32 %v1613, 7
        %v1615 = vsub.s32 0, %v1614
        %v1616 = vrot.slane %v439, %v1615
        %v1617 = vlaneseq
        %v1618 = vshrl.u32 %v1617, 7
        %v1619 = vsub.s32 0, %v1618
        %v1620 = vrot.slane %v440, %v1619
        %v1621 = vlaneseq
        %v1622 = vshrl.u32 %v1621, 7
        %v1623 = vsub.s32 0, %v1622
        %v1624 = vrot.slane %v441, %v1623
        %v1625 = vlaneseq
        %v1626 = vshrl.u32 %v1625, 7
        %v1627 = vsub.s32 0, %v1626
        %v1628 = vrot.slane %v442, %v1627
        %v1629 = vmul.f32 %v1595, %v1600
        %v1630 = vmul.f32 %v1594, %v1604
        %v1631 = vmul.f32 %v1593, %v1608
        %v1632 = vmul.f32 %v1592, %v1612
        %v1633 = vmul.f32 %v1591, %v1616
        %v1634 = vmul.f32 %v1590, %v1620
        %v1635 = vmul.f32 %v1589, %v1624
        %v1636 = vmul.f32 %v1596, %v1628
        %v1637 = vld [vmem:[#allocation10] sm:$0xff]
        %vm1638 = vcmask 588800
        %v1640 = vsel %vm1638, %v1637, 0
        %1642 = vmatprep.subr.mxu0 0.0
        %1643 = vmatpush1.msra.mxu0 0.0
        %1644 = vmatprep.subr.mxu0 0.0
        %1645 = vmatpush1.msra.mxu0 0.0
        %1646 = vmatprep.subr.mxu0 0.0
        %1647 = vmatpush1.msra.mxu0 0.0
        %1648 = vmatprep.subr.mxu0 0.0
        %1649 = vmatpush1.msra.mxu0 0.0
        %1650 = vmatprep.subr.mxu0 0.0
        %1651 = vmatpush1.msra.mxu0 0.0
        %1652 = vmatprep.subr.mxu0 0.0
        %1653 = vmatpush1.msra.mxu0 0.0
        %1654 = vmatprep.subr.mxu0 0.0
        %1655 = vmatpush1.msra.mxu0 0.0
        %1656 = vmatprep.subr.mxu0 %v1630
        %1657 = vmatpush1.msra.mxu0 %v1629
        %1658 = vmatprep.subr.mxu0 %v1565
        %1659 = vmatpush1.msra.mxu0 %v1564
        %1660 = vmatprep.subr.mxu0 %v1500
        %1661 = vmatpush1.msra.mxu0 %v1499
        %1662 = vmatprep.subr.mxu0 %v1435
        %1663 = vmatpush1.msra.mxu0 %v1434
        %1664 = vmatprep.subr.mxu0 %v1108
        %1665 = vmatpush1.msra.mxu0 %v1107
        %1666 = vmatprep.subr.mxu0 %v1370
        %1667 = vmatpush1.msra.mxu0 %v1369
        %1668 = vmatprep.subr.mxu0 %v1305
        %1669 = vmatpush1.msra.mxu0 %v1304
        %1670 = vmatprep.subr.mxu0 %v1240
        %1671 = vmatpush1.msra.mxu0 %v1239
        %1672 = vmatprep.subr.mxu0 %v1175
        %1673 = vmatpush1.msra.mxu0 %v1174
        %1674 = vmatprep.subr.mxu0 0.0
        %1675 = vmatpush2.msra.mxu0 0.0
        %1676 = vmatprep.subr.mxu0 0.0
        %1677 = vmatpush2.msra.mxu0 0.0
        %1678 = vmatprep.subr.mxu0 0.0
        %1679 = vmatpush2.msra.mxu0 0.0
        %1680 = vmatprep.subr.mxu0 0.0
        %1681 = vmatpush2.msra.mxu0 0.0
        %1682 = vmatprep.subr.mxu0 0.0
        %1683 = vmatpush2.msra.mxu0 0.0
        %1684 = vmatprep.subr.mxu0 0.0
        %1685 = vmatpush2.msra.mxu0 0.0
        %1686 = vmatprep.subr.mxu0 0.0
        %1687 = vmatpush2.msra.mxu0 0.0
        %1688 = vmatprep.subr.mxu0 0.0
        %1689 = vmatpush2.msra.mxu0 0.0
        %1690 = vmatprep.subr.mxu0 0.0
        %1691 = vmatpush2.msra.mxu0 0.0
        %1692 = vmatprep.subr.mxu0 0.0
        %1693 = vmatpush2.msra.mxu0 0.0
        %1694 = vmatprep.subr.mxu0 0.0
        %1695 = vmatpush2.msra.mxu0 0.0
        %1696 = vmatprep.subr.mxu0 0.0
        %1697 = vmatpush2.msra.mxu0 0.0
        %1698 = vmatprep.subr.mxu0 0.0
        %1699 = vmatpush2.msra.mxu0 0.0
        %1700 = vmatprep.subr.mxu0 0.0
        %1701 = vmatpush2.msra.mxu0 0.0
        %1702 = vmatprep.subr.mxu0 0.0
        %1703 = vmatpush2.msra.mxu0 0.0
        %1704 = vmatprep.subr.mxu0 0.0
        %1705 = vmatpush2.msra.mxu0 0.0
        %1706 = vmatprep.mubr.f32.mxu0 0.0
        %1707 = vmatmul.mubr.f32.gmra.mxu0 %v1640
        %v1708 = vpop.f32.mrf.mxu0
        %v1709 = vadd.f32 0.0, %v1708
        %v1710 = vpop.f32.mrf.mxu0
        %v1711 = vadd.f32 0.0, %v1710
        %1712 = vdwg.mxu0
        %1713 = vmatprep.subr.mxu0 0.0
        %1714 = vmatpush1.msra.mxu0 0.0
        %1715 = vmatprep.subr.mxu0 0.0
        %1716 = vmatpush1.msra.mxu0 0.0
        %1717 = vmatprep.subr.mxu0 0.0
        %1718 = vmatpush1.msra.mxu0 0.0
        %1719 = vmatprep.subr.mxu0 0.0
        %1720 = vmatpush1.msra.mxu0 0.0
        %1721 = vmatprep.subr.mxu0 0.0
        %1722 = vmatpush1.msra.mxu0 0.0
        %1723 = vmatprep.subr.mxu0 0.0
        %1724 = vmatpush1.msra.mxu0 0.0
        %1725 = vmatprep.subr.mxu0 0.0
        %1726 = vmatpush1.msra.mxu0 0.0
        %1727 = vmatprep.subr.mxu0 %v1632
        %1728 = vmatpush1.msra.mxu0 %v1631
        %1729 = vmatprep.subr.mxu0 %v1567
        %1730 = vmatpush1.msra.mxu0 %v1566
        %1731 = vmatprep.subr.mxu0 %v1502
        %1732 = vmatpush1.msra.mxu0 %v1501
        %1733 = vmatprep.subr.mxu0 %v1437
        %1734 = vmatpush1.msra.mxu0 %v1436
        %1735 = vmatprep.subr.mxu0 %v1110
        %1736 = vmatpush1.msra.mxu0 %v1109
        %1737 = vmatprep.subr.mxu0 %v1372
        %1738 = vmatpush1.msra.mxu0 %v1371
        %1739 = vmatprep.subr.mxu0 %v1307
        %1740 = vmatpush1.msra.mxu0 %v1306
        %1741 = vmatprep.subr.mxu0 %v1242
        %1742 = vmatpush1.msra.mxu0 %v1241
        %1743 = vmatprep.subr.mxu0 %v1177
        %1744 = vmatpush1.msra.mxu0 %v1176
        %1745 = vmatprep.subr.mxu0 0.0
        %1746 = vmatpush2.msra.mxu0 0.0
        %1747 = vmatprep.subr.mxu0 0.0
        %1748 = vmatpush2.msra.mxu0 0.0
        %1749 = vmatprep.subr.mxu0 0.0
        %1750 = vmatpush2.msra.mxu0 0.0
        %1751 = vmatprep.subr.mxu0 0.0
        %1752 = vmatpush2.msra.mxu0 0.0
        %1753 = vmatprep.subr.mxu0 0.0
        %1754 = vmatpush2.msra.mxu0 0.0
        %1755 = vmatprep.subr.mxu0 0.0
        %1756 = vmatpush2.msra.mxu0 0.0
        %1757 = vmatprep.subr.mxu0 0.0
        %1758 = vmatpush2.msra.mxu0 0.0
        %1759 = vmatprep.subr.mxu0 0.0
        %1760 = vmatpush2.msra.mxu0 0.0
        %1761 = vmatprep.subr.mxu0 0.0
        %1762 = vmatpush2.msra.mxu0 0.0
        %1763 = vmatprep.subr.mxu0 0.0
        %1764 = vmatpush2.msra.mxu0 0.0
        %1765 = vmatprep.subr.mxu0 0.0
        %1766 = vmatpush2.msra.mxu0 0.0
        %1767 = vmatprep.subr.mxu0 0.0
        %1768 = vmatpush2.msra.mxu0 0.0
        %1769 = vmatprep.subr.mxu0 0.0
        %1770 = vmatpush2.msra.mxu0 0.0
        %1771 = vmatprep.subr.mxu0 0.0
        %1772 = vmatpush2.msra.mxu0 0.0
        %1773 = vmatprep.subr.mxu0 0.0
        %1774 = vmatpush2.msra.mxu0 0.0
        %1775 = vmatprep.subr.mxu0 0.0
        %1776 = vmatpush2.msra.mxu0 0.0
        %1777 = vmatprep.mubr.f32.mxu0 0.0
        %1778 = vmatmul.mubr.f32.gmra.mxu0 %v1640
        %v1779 = vpop.f32.mrf.mxu0
        %v1780 = vadd.f32 0.0, %v1779
        %v1781 = vpop.f32.mrf.mxu0
        %v1782 = vadd.f32 0.0, %v1781
        %1783 = vdwg.mxu0
        %1784 = vmatprep.subr.mxu0 0.0
        %1785 = vmatpush1.msra.mxu0 0.0
        %1786 = vmatprep.subr.mxu0 0.0
        %1787 = vmatpush1.msra.mxu0 0.0
        %1788 = vmatprep.subr.mxu0 0.0
        %1789 = vmatpush1.msra.mxu0 0.0
        %1790 = vmatprep.subr.mxu0 0.0
        %1791 = vmatpush1.msra.mxu0 0.0
        %1792 = vmatprep.subr.mxu0 0.0
        %1793 = vmatpush1.msra.mxu0 0.0
        %1794 = vmatprep.subr.mxu0 0.0
        %1795 = vmatpush1.msra.mxu0 0.0
        %1796 = vmatprep.subr.mxu0 0.0
        %1797 = vmatpush1.msra.mxu0 0.0
        %1798 = vmatprep.subr.mxu0 %v1634
        %1799 = vmatpush1.msra.mxu0 %v1633
        %1800 = vmatprep.subr.mxu0 %v1569
        %1801 = vmatpush1.msra.mxu0 %v1568
        %1802 = vmatprep.subr.mxu0 %v1504
        %1803 = vmatpush1.msra.mxu0 %v1503
        %1804 = vmatprep.subr.mxu0 %v1439
        %1805 = vmatpush1.msra.mxu0 %v1438
        %1806 = vmatprep.subr.mxu0 %v1112
        %1807 = vmatpush1.msra.mxu0 %v1111
        %1808 = vmatprep.subr.mxu0 %v1374
        %1809 = vmatpush1.msra.mxu0 %v1373
        %1810 = vmatprep.subr.mxu0 %v1309
        %1811 = vmatpush1.msra.mxu0 %v1308
        %1812 = vmatprep.subr.mxu0 %v1244
        %1813 = vmatpush1.msra.mxu0 %v1243
        %1814 = vmatprep.subr.mxu0 %v1179
        %1815 = vmatpush1.msra.mxu0 %v1178
        %1816 = vmatprep.subr.mxu0 0.0
        %1817 = vmatpush2.msra.mxu0 0.0
        %1818 = vmatprep.subr.mxu0 0.0
        %1819 = vmatpush2.msra.mxu0 0.0
        %1820 = vmatprep.subr.mxu0 0.0
        %1821 = vmatpush2.msra.mxu0 0.0
        %1822 = vmatprep.subr.mxu0 0.0
        %1823 = vmatpush2.msra.mxu0 0.0
        %1824 = vmatprep.subr.mxu0 0.0
        %1825 = vmatpush2.msra.mxu0 0.0
        %1826 = vmatprep.subr.mxu0 0.0
        %1827 = vmatpush2.msra.mxu0 0.0
        %1828 = vmatprep.subr.mxu0 0.0
        %1829 = vmatpush2.msra.mxu0 0.0
        %1830 = vmatprep.subr.mxu0 0.0
        %1831 = vmatpush2.msra.mxu0 0.0
        %1832 = vmatprep.subr.mxu0 0.0
        %1833 = vmatpush2.msra.mxu0 0.0
        %1834 = vmatprep.subr.mxu0 0.0
        %1835 = vmatpush2.msra.mxu0 0.0
        %1836 = vmatprep.subr.mxu0 0.0
        %1837 = vmatpush2.msra.mxu0 0.0
        %1838 = vmatprep.subr.mxu0 0.0
        %1839 = vmatpush2.msra.mxu0 0.0
        %1840 = vmatprep.subr.mxu0 0.0
        %1841 = vmatpush2.msra.mxu0 0.0
        %1842 = vmatprep.subr.mxu0 0.0
        %1843 = vmatpush2.msra.mxu0 0.0
        %1844 = vmatprep.subr.mxu0 0.0
        %1845 = vmatpush2.msra.mxu0 0.0
        %1846 = vmatprep.subr.mxu0 0.0
        %1847 = vmatpush2.msra.mxu0 0.0
        %1848 = vmatprep.mubr.f32.mxu0 0.0
        %1849 = vmatmul.mubr.f32.gmra.mxu0 %v1640
        %v1850 = vpop.f32.mrf.mxu0
        %v1851 = vadd.f32 0.0, %v1850
        %v1852 = vpop.f32.mrf.mxu0
        %v1853 = vadd.f32 0.0, %v1852
        %1854 = vdwg.mxu0
        %1855 = vmatprep.subr.mxu0 0.0
        %1856 = vmatpush1.msra.mxu0 0.0
        %1857 = vmatprep.subr.mxu0 0.0
        %1858 = vmatpush1.msra.mxu0 0.0
        %1859 = vmatprep.subr.mxu0 0.0
        %1860 = vmatpush1.msra.mxu0 0.0
        %1861 = vmatprep.subr.mxu0 0.0
        %1862 = vmatpush1.msra.mxu0 0.0
        %1863 = vmatprep.subr.mxu0 0.0
        %1864 = vmatpush1.msra.mxu0 0.0
        %1865 = vmatprep.subr.mxu0 0.0
        %1866 = vmatpush1.msra.mxu0 0.0
        %1867 = vmatprep.subr.mxu0 0.0
        %1868 = vmatpush1.msra.mxu0 0.0
        %1869 = vmatprep.subr.mxu0 %v1636
        %1870 = vmatpush1.msra.mxu0 %v1635
        %1871 = vmatprep.subr.mxu0 %v1571
        %1872 = vmatpush1.msra.mxu0 %v1570
        %1873 = vmatprep.subr.mxu0 %v1506
        %1874 = vmatpush1.msra.mxu0 %v1505
        %1875 = vmatprep.subr.mxu0 %v1441
        %1876 = vmatpush1.msra.mxu0 %v1440
        %1877 = vmatprep.subr.mxu0 %v1114
        %1878 = vmatpush1.msra.mxu0 %v1113
        %1879 = vmatprep.subr.mxu0 %v1376
        %1880 = vmatpush1.msra.mxu0 %v1375
        %1881 = vmatprep.subr.mxu0 %v1311
        %1882 = vmatpush1.msra.mxu0 %v1310
        %1883 = vmatprep.subr.mxu0 %v1246
        %1884 = vmatpush1.msra.mxu0 %v1245
        %1885 = vmatprep.subr.mxu0 %v1181
        %1886 = vmatpush1.msra.mxu0 %v1180
        %1887 = vmatprep.subr.mxu0 0.0
        %1888 = vmatpush2.msra.mxu0 0.0
        %1889 = vmatprep.subr.mxu0 0.0
        %1890 = vmatpush2.msra.mxu0 0.0
        %1891 = vmatprep.subr.mxu0 0.0
        %1892 = vmatpush2.msra.mxu0 0.0
        %1893 = vmatprep.subr.mxu0 0.0
        %1894 = vmatpush2.msra.mxu0 0.0
        %1895 = vmatprep.subr.mxu0 0.0
        %1896 = vmatpush2.msra.mxu0 0.0
        %1897 = vmatprep.subr.mxu0 0.0
        %1898 = vmatpush2.msra.mxu0 0.0
        %1899 = vmatprep.subr.mxu0 0.0
        %1900 = vmatpush2.msra.mxu0 0.0
        %1901 = vmatprep.subr.mxu0 0.0
        %1902 = vmatpush2.msra.mxu0 0.0
        %1903 = vmatprep.subr.mxu0 0.0
        %1904 = vmatpush2.msra.mxu0 0.0
        %1905 = vmatprep.subr.mxu0 0.0
        %1906 = vmatpush2.msra.mxu0 0.0
        %1907 = vmatprep.subr.mxu0 0.0
        %1908 = vmatpush2.msra.mxu0 0.0
        %1909 = vmatprep.subr.mxu0 0.0
        %1910 = vmatpush2.msra.mxu0 0.0
        %1911 = vmatprep.subr.mxu0 0.0
        %1912 = vmatpush2.msra.mxu0 0.0
        %1913 = vmatprep.subr.mxu0 0.0
        %1914 = vmatpush2.msra.mxu0 0.0
        %1915 = vmatprep.subr.mxu0 0.0
        %1916 = vmatpush2.msra.mxu0 0.0
        %1917 = vmatprep.subr.mxu0 0.0
        %1918 = vmatpush2.msra.mxu0 0.0
        %1919 = vmatprep.mubr.f32.mxu0 0.0
        %1920 = vmatmul.mubr.f32.gmra.mxu0 %v1640
        %v1921 = vpop.f32.mrf.mxu0
        %v1922 = vadd.f32 0.0, %v1921
        %v1923 = vpop.f32.mrf.mxu0
        %v1924 = vadd.f32 0.0, %v1923
        %1925 = vdwg.mxu0
        %1926 = vset.pattern.permute.xlu0 1
        %1927 = vperm.xlu0 %1926, %v426
        %v1928 = vpop.permute.xlu0 %1927
        %v1930 = vmul.f32 %v1709, %v1928
        %v1931 = vmul.f32 %v1711, %v1928
        %v1932 = vmul.f32 %v1780, %v1928
        %v1933 = vmul.f32 %v1782, %v1928
        %v1934 = vmul.f32 %v1851, %v1928
        %v1935 = vmul.f32 %v1853, %v1928
        %v1936 = vmul.f32 %v1922, %v1928
        %v1937 = vmul.f32 %v1924, %v1928
        %1938 = vset.pattern.permute.xlu0 2
        %1939 = vperm.xlu0 %1938, %v426
        %v1940 = vpop.permute.xlu0 %1939
        %v1942 = vadd.f32 %v1930, %v1940
        %v1943 = vadd.f32 %v1931, %v1940
        %v1944 = vadd.f32 %v1932, %v1940
        %v1945 = vadd.f32 %v1933, %v1940
        %v1946 = vadd.f32 %v1934, %v1940
        %v1947 = vadd.f32 %v1935, %v1940
        %v1948 = vadd.f32 %v1936, %v1940
        %v1949 = vadd.f32 %v1937, %v1940
        %vm1950 = vcmp.gt.f32.partialorder %v1942, 0.0
        %vm1951 = vcmp.gt.f32.partialorder %v1943, 0.0
        %vm1952 = vcmp.gt.f32.partialorder %v1944, 0.0
        %vm1953 = vcmp.gt.f32.partialorder %v1945, 0.0
        %vm1954 = vcmp.gt.f32.partialorder %v1946, 0.0
        %vm1955 = vcmp.gt.f32.partialorder %v1947, 0.0
        %vm1956 = vcmp.gt.f32.partialorder %v1948, 0.0
        %vm1957 = vcmp.gt.f32.partialorder %v1949, 0.0
        %v1958 = vmul.f32 %v1942, 0.01
        %v1959 = vmul.f32 %v1943, 0.01
        %v1960 = vmul.f32 %v1944, 0.01
        %v1961 = vmul.f32 %v1945, 0.01
        %v1962 = vmul.f32 %v1946, 0.01
        %v1963 = vmul.f32 %v1947, 0.01
        %v1964 = vmul.f32 %v1948, 0.01
        %v1965 = vmul.f32 %v1949, 0.01
        %v1966 = vsel %vm1950, %v1942, %v1958
        %v1967 = vsel %vm1951, %v1943, %v1959
        %v1968 = vsel %vm1952, %v1944, %v1960
        %v1969 = vsel %vm1953, %v1945, %v1961
        %v1970 = vsel %vm1954, %v1946, %v1962
        %v1971 = vsel %vm1955, %v1947, %v1963
        %v1972 = vsel %vm1956, %v1948, %v1964
        %v1973 = vsel %vm1957, %v1949, %v1965
        %1974 = vrot.lane.b32.xlu0 %v1966, 33
        %v1975 = vpop.permute.xlu0 %1974
        %1976 = vrot.lane.b32.xlu0 %v1967, 33
        %v1977 = vpop.permute.xlu0 %1976
        %1978 = vrot.lane.b32.xlu0 %v1968, 33
        %v1979 = vpop.permute.xlu0 %1978
        %1980 = vrot.lane.b32.xlu0 %v1969, 33
        %v1981 = vpop.permute.xlu0 %1980
        %1982 = vrot.lane.b32.xlu0 %v1970, 33
        %v1983 = vpop.permute.xlu0 %1982
        %1984 = vrot.lane.b32.xlu0 %v1971, 33
        %v1985 = vpop.permute.xlu0 %1984
        %1986 = vrot.lane.b32.xlu0 %v1972, 33
        %v1987 = vpop.permute.xlu0 %1986
        %1988 = vrot.lane.b32.xlu0 %v1973, 33
        %v1989 = vpop.permute.xlu0 %1988
        %v1990 = vsel %vm1133, %v1987, %v1989
        %v1991 = vsel %vm1133, %v1985, %v1987
        %v1992 = vsel %vm1133, %v1983, %v1985
        %v1993 = vsel %vm1133, %v1981, %v1983
        %v1994 = vsel %vm1133, %v1979, %v1981
        %v1995 = vsel %vm1133, %v1977, %v1979
        %v1996 = vsel %vm1133, %v1975, %v1977
        %v1997 = vsel %vm1133, %v1989, %v1975
        %v1998 = vmul.f32 %v1997, %v1145
        %v1999 = vmul.f32 %v1996, %v1149
        %v2000 = vmul.f32 %v1995, %v1153
        %v2001 = vmul.f32 %v1994, %v1157
        %v2002 = vmul.f32 %v1993, %v1161
        %v2003 = vmul.f32 %v1992, %v1165
        %v2004 = vmul.f32 %v1991, %v1169
        %v2005 = vmul.f32 %v1990, %v1173
        %2006 = vrot.lane.b32.xlu0 %v1966, 32
        %v2007 = vpop.permute.xlu0 %2006
        %2008 = vrot.lane.b32.xlu0 %v1967, 32
        %v2009 = vpop.permute.xlu0 %2008
        %2010 = vrot.lane.b32.xlu0 %v1968, 32
        %v2011 = vpop.permute.xlu0 %2010
        %2012 = vrot.lane.b32.xlu0 %v1969, 32
        %v2013 = vpop.permute.xlu0 %2012
        %2014 = vrot.lane.b32.xlu0 %v1970, 32
        %v2015 = vpop.permute.xlu0 %2014
        %2016 = vrot.lane.b32.xlu0 %v1971, 32
        %v2017 = vpop.permute.xlu0 %2016
        %2018 = vrot.lane.b32.xlu0 %v1972, 32
        %v2019 = vpop.permute.xlu0 %2018
        %2020 = vrot.lane.b32.xlu0 %v1973, 32
        %v2021 = vpop.permute.xlu0 %2020
        %v2022 = vsel %vm1198, %v2019, %v2021
        %v2023 = vsel %vm1198, %v2017, %v2019
        %v2024 = vsel %vm1198, %v2015, %v2017
        %v2025 = vsel %vm1198, %v2013, %v2015
        %v2026 = vsel %vm1198, %v2011, %v2013
        %v2027 = vsel %vm1198, %v2009, %v2011
        %v2028 = vsel %vm1198, %v2007, %v2009
        %v2029 = vsel %vm1198, %v2021, %v2007
        %v2030 = vmul.f32 %v2029, %v1210
        %v2031 = vmul.f32 %v2028, %v1214
        %v2032 = vmul.f32 %v2027, %v1218
        %v2033 = vmul.f32 %v2026, %v1222
        %v2034 = vmul.f32 %v2025, %v1226
        %v2035 = vmul.f32 %v2024, %v1230
        %v2036 = vmul.f32 %v2023, %v1234
        %v2037 = vmul.f32 %v2022, %v1238
        %2038 = vrot.lane.b32.xlu0 %v1966, 31
        %v2039 = vpop.permute.xlu0 %2038
        %2040 = vrot.lane.b32.xlu0 %v1967, 31
        %v2041 = vpop.permute.xlu0 %2040
        %2042 = vrot.lane.b32.xlu0 %v1968, 31
        %v2043 = vpop.permute.xlu0 %2042
        %2044 = vrot.lane.b32.xlu0 %v1969, 31
        %v2045 = vpop.permute.xlu0 %2044
        %2046 = vrot.lane.b32.xlu0 %v1970, 31
        %v2047 = vpop.permute.xlu0 %2046
        %2048 = vrot.lane.b32.xlu0 %v1971, 31
        %v2049 = vpop.permute.xlu0 %2048
        %2050 = vrot.lane.b32.xlu0 %v1972, 31
        %v2051 = vpop.permute.xlu0 %2050
        %2052 = vrot.lane.b32.xlu0 %v1973, 31
        %v2053 = vpop.permute.xlu0 %2052
        %v2054 = vsel %vm1263, %v2051, %v2053
        %v2055 = vsel %vm1263, %v2049, %v2051
        %v2056 = vsel %vm1263, %v2047, %v2049
        %v2057 = vsel %vm1263, %v2045, %v2047
        %v2058 = vsel %vm1263, %v2043, %v2045
        %v2059 = vsel %vm1263, %v2041, %v2043
        %v2060 = vsel %vm1263, %v2039, %v2041
        %v2061 = vsel %vm1263, %v2053, %v2039
        %v2062 = vmul.f32 %v2061, %v1275
        %v2063 = vmul.f32 %v2060, %v1279
        %v2064 = vmul.f32 %v2059, %v1283
        %v2065 = vmul.f32 %v2058, %v1287
        %v2066 = vmul.f32 %v2057, %v1291
        %v2067 = vmul.f32 %v2056, %v1295
        %v2068 = vmul.f32 %v2055, %v1299
        %v2069 = vmul.f32 %v2054, %v1303
        %2070 = vrot.lane.b32.xlu0 %v1966, 1
        %v2071 = vpop.permute.xlu0 %2070
        %2072 = vrot.lane.b32.xlu0 %v1967, 1
        %v2073 = vpop.permute.xlu0 %2072
        %2074 = vrot.lane.b32.xlu0 %v1968, 1
        %v2075 = vpop.permute.xlu0 %2074
        %2076 = vrot.lane.b32.xlu0 %v1969, 1
        %v2077 = vpop.permute.xlu0 %2076
        %2078 = vrot.lane.b32.xlu0 %v1970, 1
        %v2079 = vpop.permute.xlu0 %2078
        %2080 = vrot.lane.b32.xlu0 %v1971, 1
        %v2081 = vpop.permute.xlu0 %2080
        %2082 = vrot.lane.b32.xlu0 %v1972, 1
        %v2083 = vpop.permute.xlu0 %2082
        %2084 = vrot.lane.b32.xlu0 %v1973, 1
        %v2085 = vpop.permute.xlu0 %2084
        %v2086 = vsel %vm1328, %v2083, %v2085
        %v2087 = vsel %vm1328, %v2081, %v2083
        %v2088 = vsel %vm1328, %v2079, %v2081
        %v2089 = vsel %vm1328, %v2077, %v2079
        %v2090 = vsel %vm1328, %v2075, %v2077
        %v2091 = vsel %vm1328, %v2073, %v2075
        %v2092 = vsel %vm1328, %v2071, %v2073
        %v2093 = vsel %vm1328, %v2085, %v2071
        %v2094 = vmul.f32 %v2093, %v1340
        %v2095 = vmul.f32 %v2092, %v1344
        %v2096 = vmul.f32 %v2091, %v1348
        %v2097 = vmul.f32 %v2090, %v1352
        %v2098 = vmul.f32 %v2089, %v1356
        %v2099 = vmul.f32 %v2088, %v1360
        %v2100 = vmul.f32 %v2087, %v1364
        %v2101 = vmul.f32 %v2086, %v1368
        %2102 = vrot.lane.b32.xlu0 %v1966, 127
        %v2103 = vpop.permute.xlu0 %2102
        %2104 = vrot.lane.b32.xlu0 %v1967, 127
        %v2105 = vpop.permute.xlu0 %2104
        %2106 = vrot.lane.b32.xlu0 %v1968, 127
        %v2107 = vpop.permute.xlu0 %2106
        %2108 = vrot.lane.b32.xlu0 %v1969, 127
        %v2109 = vpop.permute.xlu0 %2108
        %2110 = vrot.lane.b32.xlu0 %v1970, 127
        %v2111 = vpop.permute.xlu0 %2110
        %2112 = vrot.lane.b32.xlu0 %v1971, 127
        %v2113 = vpop.permute.xlu0 %2112
        %2114 = vrot.lane.b32.xlu0 %v1972, 127
        %v2115 = vpop.permute.xlu0 %2114
        %2116 = vrot.lane.b32.xlu0 %v1973, 127
        %v2117 = vpop.permute.xlu0 %2116
        %v2118 = vsel %vm1393, %v2115, %v2117
        %v2119 = vsel %vm1393, %v2113, %v2115
        %v2120 = vsel %vm1393, %v2111, %v2113
        %v2121 = vsel %vm1393, %v2109, %v2111
        %v2122 = vsel %vm1393, %v2107, %v2109
        %v2123 = vsel %vm1393, %v2105, %v2107
        %v2124 = vsel %vm1393, %v2103, %v2105
        %v2125 = vsel %vm1393, %v2117, %v2103
        %v2126 = vmul.f32 %v2124, %v1405
        %v2127 = vmul.f32 %v2123, %v1409
        %v2128 = vmul.f32 %v2122, %v1413
        %v2129 = vmul.f32 %v2121, %v1417
        %v2130 = vmul.f32 %v2120, %v1421
        %v2131 = vmul.f32 %v2119, %v1425
        %v2132 = vmul.f32 %v2118, %v1429
        %v2133 = vmul.f32 %v2125, %v1433
        %2134 = vrot.lane.b32.xlu0 %v1966, 97
        %v2135 = vpop.permute.xlu0 %2134
        %2136 = vrot.lane.b32.xlu0 %v1967, 97
        %v2137 = vpop.permute.xlu0 %2136
        %2138 = vrot.lane.b32.xlu0 %v1968, 97
        %v2139 = vpop.permute.xlu0 %2138
        %2140 = vrot.lane.b32.xlu0 %v1969, 97
        %v2141 = vpop.permute.xlu0 %2140
        %2142 = vrot.lane.b32.xlu0 %v1970, 97
        %v2143 = vpop.permute.xlu0 %2142
        %2144 = vrot.lane.b32.xlu0 %v1971, 97
        %v2145 = vpop.permute.xlu0 %2144
        %2146 = vrot.lane.b32.xlu0 %v1972, 97
        %v2147 = vpop.permute.xlu0 %2146
        %2148 = vrot.lane.b32.xlu0 %v1973, 97
        %v2149 = vpop.permute.xlu0 %2148
        %v2150 = vsel %vm1458, %v2147, %v2149
        %v2151 = vsel %vm1458, %v2145, %v2147
        %v2152 = vsel %vm1458, %v2143, %v2145
        %v2153 = vsel %vm1458, %v2141, %v2143
        %v2154 = vsel %vm1458, %v2139, %v2141
        %v2155 = vsel %vm1458, %v2137, %v2139
        %v2156 = vsel %vm1458, %v2135, %v2137
        %v2157 = vsel %vm1458, %v2149, %v2135
        %v2158 = vmul.f32 %v2156, %v1470
        %v2159 = vmul.f32 %v2155, %v1474
        %v2160 = vmul.f32 %v2154, %v1478
        %v2161 = vmul.f32 %v2153, %v1482
        %v2162 = vmul.f32 %v2152, %v1486
        %v2163 = vmul.f32 %v2151, %v1490
        %v2164 = vmul.f32 %v2150, %v1494
        %v2165 = vmul.f32 %v2157, %v1498
        %2166 = vrot.lane.b32.xlu0 %v1966, 96
        %v2167 = vpop.permute.xlu0 %2166
        %2168 = vrot.lane.b32.xlu0 %v1967, 96
        %v2169 = vpop.permute.xlu0 %2168
        %2170 = vrot.lane.b32.xlu0 %v1968, 96
        %v2171 = vpop.permute.xlu0 %2170
        %2172 = vrot.lane.b32.xlu0 %v1969, 96
        %v2173 = vpop.permute.xlu0 %2172
        %2174 = vrot.lane.b32.xlu0 %v1970, 96
        %v2175 = vpop.permute.xlu0 %2174
        %2176 = vrot.lane.b32.xlu0 %v1971, 96
        %v2177 = vpop.permute.xlu0 %2176
        %2178 = vrot.lane.b32.xlu0 %v1972, 96
        %v2179 = vpop.permute.xlu0 %2178
        %2180 = vrot.lane.b32.xlu0 %v1973, 96
        %v2181 = vpop.permute.xlu0 %2180
        %v2182 = vsel %vm1523, %v2179, %v2181
        %v2183 = vsel %vm1523, %v2177, %v2179
        %v2184 = vsel %vm1523, %v2175, %v2177
        %v2185 = vsel %vm1523, %v2173, %v2175
        %v2186 = vsel %vm1523, %v2171, %v2173
        %v2187 = vsel %vm1523, %v2169, %v2171
        %v2188 = vsel %vm1523, %v2167, %v2169
        %v2189 = vsel %vm1523, %v2181, %v2167
        %v2190 = vmul.f32 %v2188, %v1535
        %v2191 = vmul.f32 %v2187, %v1539
        %v2192 = vmul.f32 %v2186, %v1543
        %v2193 = vmul.f32 %v2185, %v1547
        %v2194 = vmul.f32 %v2184, %v1551
        %v2195 = vmul.f32 %v2183, %v1555
        %v2196 = vmul.f32 %v2182, %v1559
        %v2197 = vmul.f32 %v2189, %v1563
        %2198 = vrot.lane.b32.xlu0 %v1966, 95
        %v2199 = vpop.permute.xlu0 %2198
        %2200 = vrot.lane.b32.xlu0 %v1967, 95
        %v2201 = vpop.permute.xlu0 %2200
        %2202 = vrot.lane.b32.xlu0 %v1968, 95
        %v2203 = vpop.permute.xlu0 %2202
        %2204 = vrot.lane.b32.xlu0 %v1969, 95
        %v2205 = vpop.permute.xlu0 %2204
        %2206 = vrot.lane.b32.xlu0 %v1970, 95
        %v2207 = vpop.permute.xlu0 %2206
        %2208 = vrot.lane.b32.xlu0 %v1971, 95
        %v2209 = vpop.permute.xlu0 %2208
        %2210 = vrot.lane.b32.xlu0 %v1972, 95
        %v2211 = vpop.permute.xlu0 %2210
        %2212 = vrot.lane.b32.xlu0 %v1973, 95
        %v2213 = vpop.permute.xlu0 %2212
        %v2214 = vsel %vm1588, %v2211, %v2213
        %v2215 = vsel %vm1588, %v2209, %v2211
        %v2216 = vsel %vm1588, %v2207, %v2209
        %v2217 = vsel %vm1588, %v2205, %v2207
        %v2218 = vsel %vm1588, %v2203, %v2205
        %v2219 = vsel %vm1588, %v2201, %v2203
        %v2220 = vsel %vm1588, %v2199, %v2201
        %v2221 = vsel %vm1588, %v2213, %v2199
        %v2222 = vmul.f32 %v2220, %v1600
        %v2223 = vmul.f32 %v2219, %v1604
        %v2224 = vmul.f32 %v2218, %v1608
        %v2225 = vmul.f32 %v2217, %v1612
        %v2226 = vmul.f32 %v2216, %v1616
        %v2227 = vmul.f32 %v2215, %v1620
        %v2228 = vmul.f32 %v2214, %v1624
        %v2229 = vmul.f32 %v2221, %v1628
        %v2230 = vld [vmem:[%s5] sm:$0xff]
        %v2232 = vsel %vm1638, %v2230, 0
        %2234 = vmatprep.subr.mxu0 0.0
        %2235 = vmatpush1.msra.mxu0 0.0
        %2236 = vmatprep.subr.mxu0 0.0
        %2237 = vmatpush1.msra.mxu0 0.0
        %2238 = vmatprep.subr.mxu0 0.0
        %2239 = vmatpush1.msra.mxu0 0.0
        %2240 = vmatprep.subr.mxu0 0.0
        %2241 = vmatpush1.msra.mxu0 0.0
        %2242 = vmatprep.subr.mxu0 0.0
        %2243 = vmatpush1.msra.mxu0 0.0
        %2244 = vmatprep.subr.mxu0 0.0
        %2245 = vmatpush1.msra.mxu0 0.0
        %2246 = vmatprep.subr.mxu0 0.0
        %2247 = vmatpush1.msra.mxu0 0.0
        %2248 = vmatprep.subr.mxu0 %v2223
        %2249 = vmatpush1.msra.mxu0 %v2222
        %2250 = vmatprep.subr.mxu0 %v2191
        %2251 = vmatpush1.msra.mxu0 %v2190
        %2252 = vmatprep.subr.mxu0 %v2159
        %2253 = vmatpush1.msra.mxu0 %v2158
        %2254 = vmatprep.subr.mxu0 %v2127
        %2255 = vmatpush1.msra.mxu0 %v2126
        %2256 = vmatprep.subr.mxu0 %v1967
        %2257 = vmatpush1.msra.mxu0 %v1966
        %2258 = vmatprep.subr.mxu0 %v2095
        %2259 = vmatpush1.msra.mxu0 %v2094
        %2260 = vmatprep.subr.mxu0 %v2063
        %2261 = vmatpush1.msra.mxu0 %v2062
        %2262 = vmatprep.subr.mxu0 %v2031
        %2263 = vmatpush1.msra.mxu0 %v2030
        %2264 = vmatprep.subr.mxu0 %v1999
        %2265 = vmatpush1.msra.mxu0 %v1998
        %2266 = vmatprep.subr.mxu0 0.0
        %2267 = vmatpush2.msra.mxu0 0.0
        %2268 = vmatprep.subr.mxu0 0.0
        %2269 = vmatpush2.msra.mxu0 0.0
        %2270 = vmatprep.subr.mxu0 0.0
        %2271 = vmatpush2.msra.mxu0 0.0
        %2272 = vmatprep.subr.mxu0 0.0
        %2273 = vmatpush2.msra.mxu0 0.0
        %2274 = vmatprep.subr.mxu0 0.0
        %2275 = vmatpush2.msra.mxu0 0.0
        %2276 = vmatprep.subr.mxu0 0.0
        %2277 = vmatpush2.msra.mxu0 0.0
        %2278 = vmatprep.subr.mxu0 0.0
        %2279 = vmatpush2.msra.mxu0 0.0
        %2280 = vmatprep.subr.mxu0 0.0
        %2281 = vmatpush2.msra.mxu0 0.0
        %2282 = vmatprep.subr.mxu0 0.0
        %2283 = vmatpush2.msra.mxu0 0.0
        %2284 = vmatprep.subr.mxu0 0.0
        %2285 = vmatpush2.msra.mxu0 0.0
        %2286 = vmatprep.subr.mxu0 0.0
        %2287 = vmatpush2.msra.mxu0 0.0
        %2288 = vmatprep.subr.mxu0 0.0
        %2289 = vmatpush2.msra.mxu0 0.0
        %2290 = vmatprep.subr.mxu0 0.0
        %2291 = vmatpush2.msra.mxu0 0.0
        %2292 = vmatprep.subr.mxu0 0.0
        %2293 = vmatpush2.msra.mxu0 0.0
        %2294 = vmatprep.subr.mxu0 0.0
        %2295 = vmatpush2.msra.mxu0 0.0
        %2296 = vmatprep.subr.mxu0 0.0
        %2297 = vmatpush2.msra.mxu0 0.0
        %2298 = vmatprep.mubr.f32.mxu0 0.0
        %2299 = vmatmul.mubr.f32.gmra.mxu0 %v2232
        %v2300 = vpop.f32.mrf.mxu0
        %v2301 = vadd.f32 0.0, %v2300
        %v2302 = vpop.f32.mrf.mxu0
        %v2303 = vadd.f32 0.0, %v2302
        %2304 = vdwg.mxu0
        %2305 = vmatprep.subr.mxu0 0.0
        %2306 = vmatpush1.msra.mxu0 0.0
        %2307 = vmatprep.subr.mxu0 0.0
        %2308 = vmatpush1.msra.mxu0 0.0
        %2309 = vmatprep.subr.mxu0 0.0
        %2310 = vmatpush1.msra.mxu0 0.0
        %2311 = vmatprep.subr.mxu0 0.0
        %2312 = vmatpush1.msra.mxu0 0.0
        %2313 = vmatprep.subr.mxu0 0.0
        %2314 = vmatpush1.msra.mxu0 0.0
        %2315 = vmatprep.subr.mxu0 0.0
        %2316 = vmatpush1.msra.mxu0 0.0
        %2317 = vmatprep.subr.mxu0 0.0
        %2318 = vmatpush1.msra.mxu0 0.0
        %2319 = vmatprep.subr.mxu0 %v2225
        %2320 = vmatpush1.msra.mxu0 %v2224
        %2321 = vmatprep.subr.mxu0 %v2193
        %2322 = vmatpush1.msra.mxu0 %v2192
        %2323 = vmatprep.subr.mxu0 %v2161
        %2324 = vmatpush1.msra.mxu0 %v2160
        %2325 = vmatprep.subr.mxu0 %v2129
        %2326 = vmatpush1.msra.mxu0 %v2128
        %2327 = vmatprep.subr.mxu0 %v1969
        %2328 = vmatpush1.msra.mxu0 %v1968
        %2329 = vmatprep.subr.mxu0 %v2097
        %2330 = vmatpush1.msra.mxu0 %v2096
        %2331 = vmatprep.subr.mxu0 %v2065
        %2332 = vmatpush1.msra.mxu0 %v2064
        %2333 = vmatprep.subr.mxu0 %v2033
        %2334 = vmatpush1.msra.mxu0 %v2032
        %2335 = vmatprep.subr.mxu0 %v2001
        %2336 = vmatpush1.msra.mxu0 %v2000
        %2337 = vmatprep.subr.mxu0 0.0
        %2338 = vmatpush2.msra.mxu0 0.0
        %2339 = vmatprep.subr.mxu0 0.0
        %2340 = vmatpush2.msra.mxu0 0.0
        %2341 = vmatprep.subr.mxu0 0.0
        %2342 = vmatpush2.msra.mxu0 0.0
        %2343 = vmatprep.subr.mxu0 0.0
        %2344 = vmatpush2.msra.mxu0 0.0
        %2345 = vmatprep.subr.mxu0 0.0
        %2346 = vmatpush2.msra.mxu0 0.0
        %2347 = vmatprep.subr.mxu0 0.0
        %2348 = vmatpush2.msra.mxu0 0.0
        %2349 = vmatprep.subr.mxu0 0.0
        %2350 = vmatpush2.msra.mxu0 0.0
        %2351 = vmatprep.subr.mxu0 0.0
        %2352 = vmatpush2.msra.mxu0 0.0
        %2353 = vmatprep.subr.mxu0 0.0
        %2354 = vmatpush2.msra.mxu0 0.0
        %2355 = vmatprep.subr.mxu0 0.0
        %2356 = vmatpush2.msra.mxu0 0.0
        %2357 = vmatprep.subr.mxu0 0.0
        %2358 = vmatpush2.msra.mxu0 0.0
        %2359 = vmatprep.subr.mxu0 0.0
        %2360 = vmatpush2.msra.mxu0 0.0
        %2361 = vmatprep.subr.mxu0 0.0
        %2362 = vmatpush2.msra.mxu0 0.0
        %2363 = vmatprep.subr.mxu0 0.0
        %2364 = vmatpush2.msra.mxu0 0.0
        %2365 = vmatprep.subr.mxu0 0.0
        %2366 = vmatpush2.msra.mxu0 0.0
        %2367 = vmatprep.subr.mxu0 0.0
        %2368 = vmatpush2.msra.mxu0 0.0
        %2369 = vmatprep.mubr.f32.mxu0 0.0
        %2370 = vmatmul.mubr.f32.gmra.mxu0 %v2232
        %v2371 = vpop.f32.mrf.mxu0
        %v2372 = vadd.f32 0.0, %v2371
        %v2373 = vpop.f32.mrf.mxu0
        %v2374 = vadd.f32 0.0, %v2373
        %2375 = vdwg.mxu0
        %2376 = vmatprep.subr.mxu0 0.0
        %2377 = vmatpush1.msra.mxu0 0.0
        %2378 = vmatprep.subr.mxu0 0.0
        %2379 = vmatpush1.msra.mxu0 0.0
        %2380 = vmatprep.subr.mxu0 0.0
        %2381 = vmatpush1.msra.mxu0 0.0
        %2382 = vmatprep.subr.mxu0 0.0
        %2383 = vmatpush1.msra.mxu0 0.0
        %2384 = vmatprep.subr.mxu0 0.0
        %2385 = vmatpush1.msra.mxu0 0.0
        %2386 = vmatprep.subr.mxu0 0.0
        %2387 = vmatpush1.msra.mxu0 0.0
        %2388 = vmatprep.subr.mxu0 0.0
        %2389 = vmatpush1.msra.mxu0 0.0
        %2390 = vmatprep.subr.mxu0 %v2227
        %2391 = vmatpush1.msra.mxu0 %v2226
        %2392 = vmatprep.subr.mxu0 %v2195
        %2393 = vmatpush1.msra.mxu0 %v2194
        %2394 = vmatprep.subr.mxu0 %v2163
        %2395 = vmatpush1.msra.mxu0 %v2162
        %2396 = vmatprep.subr.mxu0 %v2131
        %2397 = vmatpush1.msra.mxu0 %v2130
        %2398 = vmatprep.subr.mxu0 %v1971
        %2399 = vmatpush1.msra.mxu0 %v1970
        %2400 = vmatprep.subr.mxu0 %v2099
        %2401 = vmatpush1.msra.mxu0 %v2098
        %2402 = vmatprep.subr.mxu0 %v2067
        %2403 = vmatpush1.msra.mxu0 %v2066
        %2404 = vmatprep.subr.mxu0 %v2035
        %2405 = vmatpush1.msra.mxu0 %v2034
        %2406 = vmatprep.subr.mxu0 %v2003
        %2407 = vmatpush1.msra.mxu0 %v2002
        %2408 = vmatprep.subr.mxu0 0.0
        %2409 = vmatpush2.msra.mxu0 0.0
        %2410 = vmatprep.subr.mxu0 0.0
        %2411 = vmatpush2.msra.mxu0 0.0
        %2412 = vmatprep.subr.mxu0 0.0
        %2413 = vmatpush2.msra.mxu0 0.0
        %2414 = vmatprep.subr.mxu0 0.0
        %2415 = vmatpush2.msra.mxu0 0.0
        %2416 = vmatprep.subr.mxu0 0.0
        %2417 = vmatpush2.msra.mxu0 0.0
        %2418 = vmatprep.subr.mxu0 0.0
        %2419 = vmatpush2.msra.mxu0 0.0
        %2420 = vmatprep.subr.mxu0 0.0
        %2421 = vmatpush2.msra.mxu0 0.0
        %2422 = vmatprep.subr.mxu0 0.0
        %2423 = vmatpush2.msra.mxu0 0.0
        %2424 = vmatprep.subr.mxu0 0.0
        %2425 = vmatpush2.msra.mxu0 0.0
        %2426 = vmatprep.subr.mxu0 0.0
        %2427 = vmatpush2.msra.mxu0 0.0
        %2428 = vmatprep.subr.mxu0 0.0
        %2429 = vmatpush2.msra.mxu0 0.0
        %2430 = vmatprep.subr.mxu0 0.0
        %2431 = vmatpush2.msra.mxu0 0.0
        %2432 = vmatprep.subr.mxu0 0.0
        %2433 = vmatpush2.msra.mxu0 0.0
        %2434 = vmatprep.subr.mxu0 0.0
        %2435 = vmatpush2.msra.mxu0 0.0
        %2436 = vmatprep.subr.mxu0 0.0
        %2437 = vmatpush2.msra.mxu0 0.0
        %2438 = vmatprep.subr.mxu0 0.0
        %2439 = vmatpush2.msra.mxu0 0.0
        %2440 = vmatprep.mubr.f32.mxu0 0.0
        %2441 = vmatmul.mubr.f32.gmra.mxu0 %v2232
        %v2442 = vpop.f32.mrf.mxu0
        %v2443 = vadd.f32 0.0, %v2442
        %v2444 = vpop.f32.mrf.mxu0
        %v2445 = vadd.f32 0.0, %v2444
        %2446 = vdwg.mxu0
        %2447 = vmatprep.subr.mxu0 0.0
        %2448 = vmatpush1.msra.mxu0 0.0
        %2449 = vmatprep.subr.mxu0 0.0
        %2450 = vmatpush1.msra.mxu0 0.0
        %2451 = vmatprep.subr.mxu0 0.0
        %2452 = vmatpush1.msra.mxu0 0.0
        %2453 = vmatprep.subr.mxu0 0.0
        %2454 = vmatpush1.msra.mxu0 0.0
        %2455 = vmatprep.subr.mxu0 0.0
        %2456 = vmatpush1.msra.mxu0 0.0
        %2457 = vmatprep.subr.mxu0 0.0
        %2458 = vmatpush1.msra.mxu0 0.0
        %2459 = vmatprep.subr.mxu0 0.0
        %2460 = vmatpush1.msra.mxu0 0.0
        %2461 = vmatprep.subr.mxu0 %v2229
        %2462 = vmatpush1.msra.mxu0 %v2228
        %2463 = vmatprep.subr.mxu0 %v2197
        %2464 = vmatpush1.msra.mxu0 %v2196
        %2465 = vmatprep.subr.mxu0 %v2165
        %2466 = vmatpush1.msra.mxu0 %v2164
        %2467 = vmatprep.subr.mxu0 %v2133
        %2468 = vmatpush1.msra.mxu0 %v2132
        %2469 = vmatprep.subr.mxu0 %v1973
        %2470 = vmatpush1.msra.mxu0 %v1972
        %2471 = vmatprep.subr.mxu0 %v2101
        %2472 = vmatpush1.msra.mxu0 %v2100
        %2473 = vmatprep.subr.mxu0 %v2069
        %2474 = vmatpush1.msra.mxu0 %v2068
        %2475 = vmatprep.subr.mxu0 %v2037
        %2476 = vmatpush1.msra.mxu0 %v2036
        %2477 = vmatprep.subr.mxu0 %v2005
        %2478 = vmatpush1.msra.mxu0 %v2004
        %2479 = vmatprep.subr.mxu0 0.0
        %2480 = vmatpush2.msra.mxu0 0.0
        %2481 = vmatprep.subr.mxu0 0.0
        %2482 = vmatpush2.msra.mxu0 0.0
        %2483 = vmatprep.subr.mxu0 0.0
        %2484 = vmatpush2.msra.mxu0 0.0
        %2485 = vmatprep.subr.mxu0 0.0
        %2486 = vmatpush2.msra.mxu0 0.0
        %2487 = vmatprep.subr.mxu0 0.0
        %2488 = vmatpush2.msra.mxu0 0.0
        %2489 = vmatprep.subr.mxu0 0.0
        %2490 = vmatpush2.msra.mxu0 0.0
        %2491 = vmatprep.subr.mxu0 0.0
        %2492 = vmatpush2.msra.mxu0 0.0
        %2493 = vmatprep.subr.mxu0 0.0
        %2494 = vmatpush2.msra.mxu0 0.0
        %2495 = vmatprep.subr.mxu0 0.0
        %2496 = vmatpush2.msra.mxu0 0.0
        %2497 = vmatprep.subr.mxu0 0.0
        %2498 = vmatpush2.msra.mxu0 0.0
        %2499 = vmatprep.subr.mxu0 0.0
        %2500 = vmatpush2.msra.mxu0 0.0
        %2501 = vmatprep.subr.mxu0 0.0
        %2502 = vmatpush2.msra.mxu0 0.0
        %2503 = vmatprep.subr.mxu0 0.0
        %2504 = vmatpush2.msra.mxu0 0.0
        %2505 = vmatprep.subr.mxu0 0.0
        %2506 = vmatpush2.msra.mxu0 0.0
        %2507 = vmatprep.subr.mxu0 0.0
        %2508 = vmatpush2.msra.mxu0 0.0
        %2509 = vmatprep.subr.mxu0 0.0
        %2510 = vmatpush2.msra.mxu0 0.0
        %2511 = vmatprep.mubr.f32.mxu0 0.0
        %2512 = vmatmul.mubr.f32.gmra.mxu0 %v2232
        %v2513 = vpop.f32.mrf.mxu0
        %v2514 = vadd.f32 0.0, %v2513
        %v2515 = vpop.f32.mrf.mxu0
        %v2516 = vadd.f32 0.0, %v2515
        %2517 = vdwg.mxu0
        %2518 = vset.pattern.permute.xlu0 3
        %2519 = vperm.xlu0 %2518, %v426
        %v2520 = vpop.permute.xlu0 %2519
        %v2522 = vmul.f32 %v2301, %v2520
        %v2523 = vmul.f32 %v2303, %v2520
        %v2524 = vmul.f32 %v2372, %v2520
        %v2525 = vmul.f32 %v2374, %v2520
        %v2526 = vmul.f32 %v2443, %v2520
        %v2527 = vmul.f32 %v2445, %v2520
        %v2528 = vmul.f32 %v2514, %v2520
        %v2529 = vmul.f32 %v2516, %v2520
        %2530 = vset.pattern.permute.xlu0 4
        %2531 = vperm.xlu0 %2530, %v426
        %v2532 = vpop.permute.xlu0 %2531
        %v2534 = vadd.f32 %v2522, %v2532
        %v2535 = vadd.f32 %v2523, %v2532
        %v2536 = vadd.f32 %v2524, %v2532
        %v2537 = vadd.f32 %v2525, %v2532
        %v2538 = vadd.f32 %v2526, %v2532
        %v2539 = vadd.f32 %v2527, %v2532
        %v2540 = vadd.f32 %v2528, %v2532
        %v2541 = vadd.f32 %v2529, %v2532
        %vm2542 = vcmp.gt.f32.partialorder %v2534, 0.0
        %vm2543 = vcmp.gt.f32.partialorder %v2535, 0.0
        %vm2544 = vcmp.gt.f32.partialorder %v2536, 0.0
        %vm2545 = vcmp.gt.f32.partialorder %v2537, 0.0
        %vm2546 = vcmp.gt.f32.partialorder %v2538, 0.0
        %vm2547 = vcmp.gt.f32.partialorder %v2539, 0.0
        %vm2548 = vcmp.gt.f32.partialorder %v2540, 0.0
        %vm2549 = vcmp.gt.f32.partialorder %v2541, 0.0
        %v2550 = vmul.f32 %v2534, 0.01
        %v2551 = vmul.f32 %v2535, 0.01
        %v2552 = vmul.f32 %v2536, 0.01
        %v2553 = vmul.f32 %v2537, 0.01
        %v2554 = vmul.f32 %v2538, 0.01
        %v2555 = vmul.f32 %v2539, 0.01
        %v2556 = vmul.f32 %v2540, 0.01
        %v2557 = vmul.f32 %v2541, 0.01
        %v2558 = vsel %vm2542, %v2534, %v2550
        %v2559 = vsel %vm2543, %v2535, %v2551
        %v2560 = vsel %vm2544, %v2536, %v2552
        %v2561 = vsel %vm2545, %v2537, %v2553
        %v2562 = vsel %vm2546, %v2538, %v2554
        %v2563 = vsel %vm2547, %v2539, %v2555
        %v2564 = vsel %vm2548, %v2540, %v2556
        %v2565 = vsel %vm2549, %v2541, %v2557
        %2566 = vst [vmem:[%s425] sm:$0xff] %v2558
        %2567 = vst [vmem:[%s425 + $0x8] sm:$0xff] %v2559
        %2568 = vst [vmem:[%s425 + $0x10] sm:$0xff] %v2560
        %2569 = vst [vmem:[%s425 + $0x18] sm:$0xff] %v2561
        %2570 = vst [vmem:[%s425 + $0x20] sm:$0xff] %v2562
        %2571 = vst [vmem:[%s425 + $0x28] sm:$0xff] %v2563
        %2572 = vst [vmem:[%s425 + $0x30] sm:$0xff] %v2564
        %2573 = vst [vmem:[%s425 + $0x38] sm:$0xff] %v2565
        %s2574 = sand.u32 %s216, 1
        %s2575 = scalar_lea.sflag [#allocation4], %s2574
        %s2576 = sand.u32 %s216, 1
        %s2577 = smul.addr %s2576, 64
        %s2578 = scalar_lea.vmem [#allocation14], %s2577
        // Predicated region
        $region81: #{tpu_custom_call.1} parent=51 // pred_check
          %p2579 = pneg %p226
        $region82: #{tpu_custom_call.1} parent=51 // pred_check_branch
          %2581 = sbr.rel (%p2579) target = $region84
        $region83: #{tpu_custom_call.1} parent=51 // pred_region
          %s2583 = ssub.s32 1024, 1024
          %2584 = vsyncadd %s2575, %s2583
          %s2585 = smul.addr %s30, 8
          %s2586 = smul.addr %s2585, 128
          %s2587 = scalar_lea.hbm %s8, %s2586
          %s2589 = sshll.u32 %s2578, 4
          %s2590 = int_to_ptr.vmem [resolvable:$true] %s2589
          %2592 = dma.vmem_to_hbm [thread:$0]  %s2590, 1024, %s2587, %s2575
        $region84: #{tpu_custom_call.1} parent=51 // pred_fallthru
          _
      $region52: #{tpu_custom_call.1} parent=5 // pred_fallthru
        _
      %p2593 = scmp.le.s32.totalorder 2, %s25
      // Predicated region
      $region85: #{tpu_custom_call.1} parent=5 // pred_check
        %p2594 = pneg %p2593
      $region86: #{tpu_custom_call.1} parent=5 // pred_check_branch
        %2596 = sbr.rel (%p2594) target = $region88
      $region87: #{tpu_custom_call.1} parent=5 // pred_region
        %s2597 = ssub.s32 %s25, 2
        // Predicated region
        $region89: #{tpu_custom_call.1} parent=87 // pred_check
          %p2598 = pneg %p232
        $region90: #{tpu_custom_call.1} parent=87 // pred_check_branch
          %2600 = sbr.rel (%p2598) target = $region92
        $region91: #{tpu_custom_call.1} parent=87 // pred_region
          %s2601 = sand.u32 %s217, 1
          %s2602 = scalar_lea.sflag [#allocation4], %s2601
          %s2603 = sand.u32 %s217, 1
          %s2604 = smul.addr %s2603, 64
          %s2605 = scalar_lea.vmem [#allocation14], %s2604
          %2606 = dma.done %s2602, 1024
        $region92: #{tpu_custom_call.1} parent=87 // pred_fallthru
          _
      $region88: #{tpu_custom_call.1} parent=5 // pred_fallthru
        _
    $region6: #{tpu_custom_call.1} parent=1 // loop_footer
      %s29 = sadd.s32 1, %s25
    $region7: #{tpu_custom_call.1} parent=1 // loop_footer_branch
      %24 = sbr.rel target = $region3
    $region8: #{tpu_custom_call.1} parent=1 // loop_exit
      _
    %2607 = vsyncpa [#allocation3], 1
    %s2608 = scalar_lea.sflag [#allocation3], 1
    %2609 = vsyncpa %s2608, 1
    %2610 = vsyncpa [#allocation6], 1
    %s2611 = scalar_lea.sflag [#allocation6], 1
    %2612 = vsyncpa %s2611, 1
    %2613 = vsyncpa [#allocation9], 1
    %2614 = vsyncpa [#allocation12], 1
    %2615 = vsyncpa [#allocation4], 1
    %s2616 = scalar_lea.sflag [#allocation4], 1
    %2617 = vsyncpa %s2616, 1

</llo_original>
